<compile_context>
chip_gen: v5e
topology: v5e:2x2
jax: 0.10.0
libtpu: 0.0.40
codegen_flags: <defaults>
</compile_context>

<pallas_src>
import math
import functools

import jax
import jax.numpy as jnp
from jax.experimental import pallas as pl
from jax.experimental.pallas import tpu as pltpu


# ----------------------------------------------------------------------------- helpers

def _pick_block_rows(m, max_rows=512):
    """Largest row-block (multiple of 8, <= max_rows) dividing m; fall back to full m."""
    for cand in (512, 256, 128, 64, 32, 16, 8):
        if cand <= max_rows and m % cand == 0:
            return cand
    return m


def _pick_q_tile(nq):
    """Query-axis tile for the attention kernel (keeps geom blocks VMEM-friendly)."""
    if nq <= 256:
        return nq
    for cand in (256, 128, 64, 32, 16, 8):
        if nq % cand == 0:
            return cand
    return nq


# ----------------------------------------------------------------- geometry precompute
# TODO(synk): BoxRelationalEmbedding depends only on (seq_len, grid_size) — it is a tiny,
# batch-invariant, shape-only precompute, so it is done once in plain JAX (not Pallas).
def box_relational_embedding(seq_len, grid_size, dim_g=64, wave_len=1000.0):
    gh, gw = grid_size
    assert seq_len == gh * gw, "seq_len must equal grid_size[0]*grid_size[1]"
    x = jnp.arange(gh, dtype=jnp.float32)
    y = jnp.arange(gw, dtype=jnp.float32)
    px_min = jnp.repeat(x, gh)      # x.view(-1,1).expand(-1, gh).view(-1)
    py_min = jnp.tile(y, gw)        # y.view(1,-1).expand(gw, -1).view(-1)
    px_max = px_min + 1.0
    py_max = py_min + 1.0

    x_min = (px_min / gh).reshape(-1, 1)
    x_max = (px_max / gh).reshape(-1, 1)
    y_min = (py_min / gw).reshape(-1, 1)
    y_max = (py_max / gw).reshape(-1, 1)

    cx = (x_min + x_max) * 0.5
    cy = (y_min + y_max) * 0.5
    w = x_max - x_min + 1.0
    hh = y_max - y_min + 1.0

    delta_x = jnp.log(jnp.maximum(jnp.abs((cx - cx.reshape(1, -1)) / w), 0.001))
    delta_y = jnp.log(jnp.maximum(jnp.abs((cy - cy.reshape(1, -1)) / hh), 0.001))
    delta_w = jnp.log(w / w.reshape(1, -1))
    delta_h = jnp.log(hh / hh.reshape(1, -1))
    position_mat = jnp.stack([delta_x, delta_y, delta_w, delta_h], axis=-1)   # (s, s, 4)

    feat_range = jnp.arange(dim_g // 8, dtype=jnp.float32)
    dim_mat = 1.0 / jnp.power(wave_len, feat_range / (dim_g / 8.0))           # (dim_g/8,)
    mul_mat = (100.0 * position_mat)[..., None] * dim_mat.reshape(1, 1, 1, -1)
    mul_mat = mul_mat.reshape(seq_len, seq_len, -1)                           # (s, s, dim_g/2)
    return jnp.concatenate([jnp.sin(mul_mat), jnp.cos(mul_mat)], axis=-1)     # (s, s, dim_g)


# ------------------------------------------------------------------------ Pallas kernels

def _dense_kernel(x_ref, w_ref, b_ref, o_ref, *, activation, compute_dtype):
    y = jnp.dot(x_ref[...].astype(compute_dtype), w_ref[...].astype(compute_dtype),
                preferred_element_type=jnp.float32) + b_ref[...].astype(jnp.float32)
    if activation == "relu":
        y = jnp.maximum(y, 0.0)
    o_ref[...] = y.astype(o_ref.dtype)


def _ffn_kernel(x_ref, w1_ref, b1_ref, w2_ref, b2_ref, g_ref, be_ref, o_ref, h1_ref, *,
                ln_eps, compute_dtype):
    # Fused PositionWiseFeedForward: LN(x + fc2(relu(fc1(x)))).
    x = x_ref[...].astype(compute_dtype)
    h1 = jnp.dot(x, w1_ref[...].astype(compute_dtype),
                 preferred_element_type=jnp.float32) + b1_ref[...].astype(jnp.float32)
    h1_ref[...] = jnp.maximum(h1, 0.0).astype(h1_ref.dtype)      # d_ff hidden kept in VMEM
    y = jnp.dot(h1_ref[...], w2_ref[...].astype(compute_dtype),
                preferred_element_type=jnp.float32) + b2_ref[...].astype(jnp.float32)
    t = x_ref[...].astype(jnp.float32) + y
    mu = jnp.mean(t, axis=-1, keepdims=True)
    var = jnp.mean(jnp.square(t - mu), axis=-1, keepdims=True)
    tn = (t - mu) * jax.lax.rsqrt(var + ln_eps)
    o_ref[...] = (tn * g_ref[...] + be_ref[...]).astype(o_ref.dtype)


def _attn_kernel(q_ref, k_ref, v_ref, g_ref, x_ref, wo_ref, bo_ref,
                 g1_ref, b1_ref, g2_ref, b2_ref, out_ref, *, ln_eps, compute_dtype):
    # Per (batch, q-tile) block; leading block dim of 1 on q/k/v/x.
    q = q_ref[0].astype(compute_dtype)        # (h, tq, d_k)  (1/sqrt(d_k) folded into Wq)
    k = k_ref[0].astype(compute_dtype)        # (h, nk, d_k)
    v = v_ref[0].astype(compute_dtype)        # (h, nk, d_v)

    # Head-batched attention scores; contract d_k directly (no explicit kh.T).
    att = jnp.einsum("hqd,hkd->hqk", q, k, preferred_element_type=jnp.float32)
    w_mn = att - g_ref[...].astype(jnp.float32)          # -w_g + w_a  (geom batch-invariant)

    # Softmax over keys (f32), EUP reciprocal for the normalization.
    m = jnp.max(w_mn, axis=-1, keepdims=True)
    e = jnp.exp(w_mn - m)
    s = jnp.sum(e, axis=-1, keepdims=True)
    p = e * pl.reciprocal(s, approx=True)

    oh = jnp.einsum("hqk,hkd->hqd", p.astype(compute_dtype), v,
                    preferred_element_type=jnp.float32)  # (h, tq, d_v)

    # Output projection folded over heads: sum_h oh[h] @ Wo[h]  (no per-head concat).
    om = jnp.einsum("hqd,hdm->hqm", oh.astype(compute_dtype),
                    wo_ref[...].astype(compute_dtype),
                    preferred_element_type=jnp.float32)  # (h, tq, d_model)
    o = jnp.sum(om, axis=0) + bo_ref[...].astype(jnp.float32)   # (tq, d_model)

    xq = x_ref[0].astype(jnp.float32)

    def ln(t):
        mu = jnp.mean(t, axis=-1, keepdims=True)
        var = jnp.mean(jnp.square(t - mu), axis=-1, keepdims=True)
        return (t - mu) * jax.lax.rsqrt(var + ln_eps)

    t1 = ln(xq + o) * g1_ref[...] + b1_ref[...]     # MultiHeadGeometryAttention.layer_norm
    t2 = ln(xq + t1) * g2_ref[...] + b2_ref[...]    # EncoderLayer.lnorm
    out_ref[0] = t2.astype(out_ref.dtype)


# ------------------------------------------------------------------------ Pallas wrappers

def pallas_dense(x2d, w, b, *, activation=None, compute_dtype=jnp.float32):
    M, K = x2d.shape
    Nout = w.shape[1]
    bm = _pick_block_rows(M)
    kernel = functools.partial(_dense_kernel, activation=activation,
                               compute_dtype=compute_dtype)
    return pl.pallas_call(
        kernel,
        out_shape=jax.ShapeDtypeStruct((M, Nout), x2d.dtype),
        grid=(M // bm,),
        in_specs=[pl.BlockSpec((bm, K), lambda i: (i, 0)),
                  pl.BlockSpec((K, Nout), lambda i: (0, 0)),
                  pl.BlockSpec((1, Nout), lambda i: (0, 0))],
        out_specs=pl.BlockSpec((bm, Nout), lambda i: (i, 0)),
        compiler_params=pltpu.CompilerParams(dimension_semantics=("parallel",)),
    )(x2d, w, b)


def pallas_ffn(x2d, w1, b1, w2, b2, gamma, beta, *, ln_eps=1e-5, compute_dtype=jnp.float32):
    """Fused PositionWiseFeedForward: LN(x + fc2(relu(fc1(x))))."""
    M, d_model = x2d.shape
    d_ff = w1.shape[1]
    bm = _pick_block_rows(M, max_rows=256)   # cap rows: keep (bm,d_ff) hidden + both weights in VMEM
    kernel = functools.partial(_ffn_kernel, ln_eps=ln_eps, compute_dtype=compute_dtype)
    return pl.pallas_call(
        kernel,
        out_shape=jax.ShapeDtypeStruct((M, d_model), x2d.dtype),
        grid=(M // bm,),
        in_specs=[pl.BlockSpec((bm, d_model), lambda i: (i, 0)),
                  pl.BlockSpec((d_model, d_ff), lambda i: (0, 0)),
                  pl.BlockSpec((1, d_ff), lambda i: (0, 0)),
                  pl.BlockSpec((d_ff, d_model), lambda i: (0, 0)),
                  pl.BlockSpec((1, d_model), lambda i: (0, 0)),
                  pl.BlockSpec((1, d_model), lambda i: (0, 0)),
                  pl.BlockSpec((1, d_model), lambda i: (0, 0))],
        out_specs=pl.BlockSpec((bm, d_model), lambda i: (i, 0)),
        scratch_shapes=[pltpu.VMEM((bm, d_ff), compute_dtype)],
        compiler_params=pltpu.CompilerParams(dimension_semantics=("parallel",)),
    )(x2d, w1, b1, w2, b2, gamma, beta)


def pallas_attention_block(q, k, v, geom, x, wo_r, bo, g1, b1, g2, b2, *,
                           ln_eps=1e-5, compute_dtype=jnp.float32):
    """q/k: (B,h,N,d_k), v: (B,h,N,d_v), geom: (h,N,N) batch-invariant, x: (B,N,d_model)."""
    B, h, nq, d_k = q.shape
    nk, d_v = k.shape[2], v.shape[3]
    d_model = x.shape[-1]
    tq = _pick_q_tile(nq)
    kernel = functools.partial(_attn_kernel, ln_eps=ln_eps, compute_dtype=compute_dtype)
    in_specs = [
        pl.BlockSpec((1, h, tq, d_k), lambda b, qi: (b, 0, qi, 0)),   # q
        pl.BlockSpec((1, h, nk, d_k), lambda b, qi: (b, 0, 0, 0)),    # k (re-fetched on b only)
        pl.BlockSpec((1, h, nk, d_v), lambda b, qi: (b, 0, 0, 0)),    # v (re-fetched on b only)
        pl.BlockSpec((h, tq, nk), lambda b, qi: (0, qi, 0)),          # geometry bias (no batch axis)
        pl.BlockSpec((1, tq, d_model), lambda b, qi: (b, qi, 0)),     # residual input
        pl.BlockSpec((h, d_v, d_model), lambda b, qi: (0, 0, 0)),     # Wo reshaped
        pl.BlockSpec((1, d_model), lambda b, qi: (0, 0)),             # bo
        pl.BlockSpec((1, d_model), lambda b, qi: (0, 0)),             # ln1 gamma
        pl.BlockSpec((1, d_model), lambda b, qi: (0, 0)),             # ln1 beta
        pl.BlockSpec((1, d_model), lambda b, qi: (0, 0)),             # ln2 gamma
        pl.BlockSpec((1, d_model), lambda b, qi: (0, 0)),             # ln2 beta
    ]
    out_specs = pl.BlockSpec((1, tq, d_model), lambda b, qi: (b, qi, 0))
    return pl.pallas_call(
        kernel,
        out_shape=jax.ShapeDtypeStruct((B, nq, d_model), x.dtype),
        grid=(B, nq // tq),
        in_specs=in_specs,
        out_specs=out_specs,
        compiler_params=pltpu.CompilerParams(
            dimension_semantics=("parallel", "parallel")),
    )(q, k, v, geom, x, wo_r, bo, g1, b1, g2, b2)


# ------------------------------------------------------------------------ encoder forward

def encoder_layer_forward(x, geom, p, *, h, d_k, d_v, ln_eps, compute_dtype):
    B, N, d_model = x.shape
    scale = 1.0 / math.sqrt(d_k)

    # Fused QKV projection; fold the 1/sqrt(d_k) attention scale into Wq/bq.
    w_qkv = jnp.concatenate([p["wq"] * scale, p["wk"], p["wv"]], axis=1)
    b_qkv = jnp.concatenate([p["bq"] * scale, p["bk"], p["bv"]], axis=1)

    x2 = x.reshape(B * N, d_model)
    qkv = pallas_dense(x2, w_qkv, b_qkv, compute_dtype=compute_dtype)  # (B*N, 2*h*dk + h*dv)

    qk = h * d_k
    q = qkv[:, :qk].reshape(B, N, h, d_k).transpose(0, 2, 1, 3)
    k = qkv[:, qk:2 * qk].reshape(B, N, h, d_k).transpose(0, 2, 1, 3)
    v = qkv[:, 2 * qk:].reshape(B, N, h, d_v).transpose(0, 2, 1, 3)

    wo_r = p["wo"].reshape(h, d_v, d_model)
    att = pallas_attention_block(q, k, v, geom, x, wo_r, p["bo"],
                                 p["ln1_g"], p["ln1_b"], p["ln2_g"], p["ln2_b"],
                                 ln_eps=ln_eps, compute_dtype=compute_dtype)   # (B, N, d_model)

    # PositionWiseFeedForward fully fused (fc1+ReLU+fc2+residual+LN).
    a2 = att.reshape(B * N, d_model)
    y2 = pallas_ffn(a2, p["w1"], p["b1"], p["w2"], p["b2"], p["ln3_g"], p["ln3_b"],
                    ln_eps=ln_eps, compute_dtype=compute_dtype)                 # (B*N, d_model)
    return y2.reshape(B, N, d_model)


def encoder_forward(x, params, *, h, d_k, d_v, grid_size, ln_eps=1e-5,
                    compute_dtype=jnp.float32):
    """MultiLevelEncoder_woPad.forward (eval mode, attention_mask/weights/pos = None)."""
    B, N, d_model = x.shape
    # Geometry bias is batch-invariant: compute once, broadcast via index_map.
    emb = box_relational_embedding(N, grid_size)                       # (N, N, 64)
    geom_flat = pallas_dense(emb.reshape(-1, emb.shape[-1]),
                             params["wg_w"], params["wg_b"],
                             activation="relu", compute_dtype=compute_dtype)   # (N*N, h)
    geom = geom_flat.reshape(N, N, h).transpose(2, 0, 1)               # (h, N, N)

    out = x
    for layer in params["layers"]:
        out = encoder_layer_forward(out, geom, layer, h=h, d_k=d_k, d_v=d_v,
                                    ln_eps=ln_eps, compute_dtype=compute_dtype)
    return out


# ------------------------------------------------------------------------ params & reference

def init_params(key, n_layers, d_model, d_k, d_v, h, d_ff):
    def xavier(k, fi, fo):
        bound = math.sqrt(6.0 / (fi + fo))
        return jax.random.uniform(k, (fi, fo), jnp.float32, -bound, bound)

    keys = jax.random.split(key, n_layers + 1)
    kg1, kg2 = jax.random.split(keys[0])
    wg_w = xavier(kg1, 64, h)                                   # h WG heads (64 -> 1) stacked
    wg_b = jax.random.uniform(kg2, (1, h), jnp.float32, -0.1, 0.1)

    layers = []
    for li in range(n_layers):
        ks = jax.random.split(keys[li + 1], 8)
        layers.append(dict(
            wq=xavier(ks[0], d_model, h * d_k), bq=jnp.zeros((1, h * d_k), jnp.float32),
            wk=xavier(ks[1], d_model, h * d_k), bk=jnp.zeros((1, h * d_k), jnp.float32),
            wv=xavier(ks[2], d_model, h * d_v), bv=jnp.zeros((1, h * d_v), jnp.float32),
            wo=xavier(ks[3], h * d_v, d_model), bo=jnp.zeros((1, d_model), jnp.float32),
            ln1_g=jnp.ones((1, d_model), jnp.float32), ln1_b=jnp.zeros((1, d_model), jnp.float32),
            ln2_g=jnp.ones((1, d_model), jnp.float32), ln2_b=jnp.zeros((1, d_model), jnp.float32),
            w1=xavier(ks[4], d_model, d_ff),
            b1=jax.random.uniform(ks[5], (1, d_ff), jnp.float32, -0.1, 0.1),
            w2=xavier(ks[6], d_ff, d_model),
            b2=jax.random.uniform(ks[7], (1, d_model), jnp.float32, -0.1, 0.1),
            ln3_g=jnp.ones((1, d_model), jnp.float32), ln3_b=jnp.zeros((1, d_model), jnp.float32),
        ))
    return dict(wg_w=wg_w, wg_b=wg_b, layers=layers)


def reference_forward(x, params, *, h, d_k, d_v, grid_size, ln_eps=1e-5):
    """Pure-JAX mirror of the PyTorch forward (eval mode)."""
    B, N, d_model = x.shape
    emb = box_relational_embedding(N, grid_size)
    geom = jnp.maximum(emb.reshape(-1, 64) @ params["wg_w"] + params["wg_b"], 0.0)
    geom = geom.reshape(N, N, h).transpose(2, 0, 1)[None]    # (1, h, N, N) broadcast over B

    def ln(t, g, b):
        mu = jnp.mean(t, axis=-1, keepdims=True)
        var = jnp.mean(jnp.square(t - mu), axis=-1, keepdims=True)
        return (t - mu) * jax.lax.rsqrt(var + ln_eps) * g + b

    out = x
    for p in params["layers"]:
        q = (out @ p["wq"] + p["bq"]).reshape(B, N, h, d_k).transpose(0, 2, 1, 3)
        k = (out @ p["wk"] + p["bk"]).reshape(B, N, h, d_k).transpose(0, 2, 3, 1)
        v = (out @ p["wv"] + p["bv"]).reshape(B, N, h, d_v).transpose(0, 2, 1, 3)
        att = jnp.einsum("bhqd,bhdk->bhqk", q, k) / math.sqrt(d_k)
        w_mn = jax.nn.softmax(-geom + att, axis=-1)
        o = jnp.einsum("bhqk,bhkd->bhqd", w_mn, v).transpose(0, 2, 1, 3).reshape(B, N, h * d_v)
        o = o @ p["wo"] + p["bo"]
        a1 = ln(out + o, p["ln1_g"], p["ln1_b"])      # MultiHeadGeometryAttention LN
        a2 = ln(out + a1, p["ln2_g"], p["ln2_b"])     # EncoderLayer.lnorm
        ff = jnp.maximum(a2 @ p["w1"] + p["b1"], 0.0) @ p["w2"] + p["b2"]
        out = ln(a2 + ff, p["ln3_g"], p["ln3_b"])     # PWFF LN
    return out


# ------------------------------------------------------------------------ main

if __name__ == "__main__":
    # Small shapes consistent with the module (grid_size drives seq_len = gh*gw).
    B = 2
    grid_size = (4, 4)
    N = grid_size[0] * grid_size[1]          # 16 tokens
    d_model, d_k, d_v, h, d_ff = 32, 8, 8, 4, 64
    n_layers = 2

    key = jax.random.PRNGKey(0)
    kx, kp = jax.random.split(key)
    x = jax.random.normal(kx, (B, N, d_model), jnp.float32)
    params = init_params(kp, n_layers, d_model, d_k, d_v, h, d_ff)

    fwd = jax.jit(functools.partial(encoder_forward, h=h, d_k=d_k, d_v=d_v,
                                    grid_size=grid_size))
    out = jax.block_until_ready(fwd(x, params))

    ref = reference_forward(x, params, h=h, d_k=d_k, d_v=d_v, grid_size=grid_size)
    assert out.shape == (B, N, d_model)
    assert jnp.allclose(out, ref, atol=1e-2, rtol=1e-2), (
        "mismatch vs JAX reference: max abs diff = "
        f"{float(jnp.max(jnp.abs(out - ref)))}")

    print("KERNEL_OK")
</pallas_src>

<mosaic_0001>
module attributes {stable_mosaic.version = 11 : i64} {
  func.func @_dense_kernel(%arg0: i32, %arg1: memref<256x64xf32, #tpu.memory_space<vmem>>, %arg2: memref<64x4xf32, #tpu.memory_space<vmem>>, %arg3: memref<1x4xf32, #tpu.memory_space<vmem>>, %arg4: memref<256x4xf32, #tpu.memory_space<vmem>>) attributes {dimension_semantics = [#tpu.dimension_semantics<parallel>], iteration_bounds = array<i64: 1>, scalar_prefetch = 0 : i64, scratch_operands = 0 : i64, tpu.core_type = #tpu.core_type<tc>, window_params = [{transform_indices = @transform_0, window_bounds = array<i64: 256, 64>}, {pipeline_mode = #tpu.pipeline_mode<synchronous>, transform_indices = @transform_1, window_bounds = array<i64: 64, 4>}, {pipeline_mode = #tpu.pipeline_mode<synchronous>, transform_indices = @transform_2, window_bounds = array<i64: 1, 4>}, {transform_indices = @transform_3, window_bounds = array<i64: 256, 4>}]} {
    %c0 = arith.constant 0 : index
    %c0_0 = arith.constant 0 : index
    %0 = vector.load %arg1[%c0, %c0_0] : memref<256x64xf32, #tpu.memory_space<vmem>>, vector<256x64xf32>
    %c0_1 = arith.constant 0 : index
    %c0_2 = arith.constant 0 : index
    %1 = vector.load %arg2[%c0_1, %c0_2] : memref<64x4xf32, #tpu.memory_space<vmem>>, vector<64x4xf32>
    %cst = arith.constant dense<0.000000e+00> : vector<256x4xf32>
    %2 = tpu.matmul %0, %1, %cst {dimension_numbers = #tpu.dot_dimension_numbers<[1], [0], [0], [1], [0, 0, 1, 1], [], []>} : vector<256x64xf32>, vector<64x4xf32>, vector<256x4xf32> -> vector<256x4xf32>
    %c0_3 = arith.constant 0 : index
    %c0_4 = arith.constant 0 : index
    %3 = vector.load %arg3[%c0_3, %c0_4] : memref<1x4xf32, #tpu.memory_space<vmem>>, vector<1x4xf32>
    %4 = vector.broadcast %3 : vector<1x4xf32> to vector<256x4xf32>
    %5 = arith.addf %2, %4 : vector<256x4xf32>
    %cst_5 = arith.constant 0.000000e+00 : f32
    %6 = vector.broadcast %cst_5 : f32 to vector<256x4xf32>
    %7 = arith.maximumf %5, %6 : vector<256x4xf32>
    %c0_6 = arith.constant 0 : index
    %c0_7 = arith.constant 0 : index
    %8 = vector.load %arg4[%c0_6, %c0_7] : memref<256x4xf32, #tpu.memory_space<vmem>>, vector<256x4xf32>
    tpu.vector_store %arg4[%c0_6, %c0_7], %7 {strides = array<i32>} : memref<256x4xf32, #tpu.memory_space<vmem>>, vector<256x4xf32>,
    return
  }
  func.func @transform_0(%arg0: i32) -> (i32, i32) {
    %c0_i32 = arith.constant 0 : i32
    %c0_i32_0 = arith.constant 0 : i32
    return %arg0, %c0_i32 : i32, i32
  }
  func.func @transform_1(%arg0: i32) -> (i32, i32) {
    %c0_i32 = arith.constant 0 : i32
    %c0_i32_0 = arith.constant 0 : i32
    %c0_i32_1 = arith.constant 0 : i32
    return %c0_i32, %c0_i32_0 : i32, i32
  }
  func.func @transform_2(%arg0: i32) -> (i32, i32) {
    %c0_i32 = arith.constant 0 : i32
    %c0_i32_0 = arith.constant 0 : i32
    %c0_i32_1 = arith.constant 0 : i32
    return %c0_i32, %c0_i32_0 : i32, i32
  }
  func.func @transform_3(%arg0: i32) -> (i32, i32) {
    %c0_i32 = arith.constant 0 : i32
    %c0_i32_0 = arith.constant 0 : i32
    return %arg0, %c0_i32 : i32, i32
  }
}

module attributes {stable_mosaic.version = 11 : i64} {
  func.func @_dense_kernel(%arg0: i32, %arg1: memref<32x32xf32, #tpu.memory_space<vmem>>, %arg2: memref<32x96xf32, #tpu.memory_space<vmem>>, %arg3: memref<1x96xf32, #tpu.memory_space<vmem>>, %arg4: memref<32x96xf32, #tpu.memory_space<vmem>>) attributes {dimension_semantics = [#tpu.dimension_semantics<parallel>], iteration_bounds = array<i64: 1>, scalar_prefetch = 0 : i64, scratch_operands = 0 : i64, tpu.core_type = #tpu.core_type<tc>, window_params = [{transform_indices = @transform_0, window_bounds = array<i64: 32, 32>}, {pipeline_mode = #tpu.pipeline_mode<synchronous>, transform_indices = @transform_1, window_bounds = array<i64: 32, 96>}, {pipeline_mode = #tpu.pipeline_mode<synchronous>, transform_indices = @transform_2, window_bounds = array<i64: 1, 96>}, {transform_indices = @transform_3, window_bounds = array<i64: 32, 96>}]} {
    %c0 = arith.constant 0 : index
    %c0_0 = arith.constant 0 : index
    %0 = vector.load %arg1[%c0, %c0_0] : memref<32x32xf32, #tpu.memory_space<vmem>>, vector<32x32xf32>
    %c0_1 = arith.constant 0 : index
    %c0_2 = arith.constant 0 : index
    %1 = vector.load %arg2[%c0_1, %c0_2] : memref<32x96xf32, #tpu.memory_space<vmem>>, vector<32x96xf32>
    %cst = arith.constant dense<0.000000e+00> : vector<32x96xf32>
    %2 = tpu.matmul %0, %1, %cst {dimension_numbers = #tpu.dot_dimension_numbers<[1], [0], [0], [1], [0, 0, 1, 1], [], []>} : vector<32x32xf32>, vector<32x96xf32>, vector<32x96xf32> -> vector<32x96xf32>
    %c0_3 = arith.constant 0 : index
    %c0_4 = arith.constant 0 : index
    %3 = vector.load %arg3[%c0_3, %c0_4] : memref<1x96xf32, #tpu.memory_space<vmem>>, vector<1x96xf32>
    %4 = vector.broadcast %3 : vector<1x96xf32> to vector<32x96xf32>
    %5 = arith.addf %2, %4 : vector<32x96xf32>
    %c0_5 = arith.constant 0 : index
    %c0_6 = arith.constant 0 : index
    %6 = vector.load %arg4[%c0_5, %c0_6] : memref<32x96xf32, #tpu.memory_space<vmem>>, vector<32x96xf32>
    tpu.vector_store %arg4[%c0_5, %c0_6], %5 {strides = array<i32>} : memref<32x96xf32, #tpu.memory_space<vmem>>, vector<32x96xf32>,
    return
  }
  func.func @transform_0(%arg0: i32) -> (i32, i32) {
    %c0_i32 = arith.constant 0 : i32
    %c0_i32_0 = arith.constant 0 : i32
    return %arg0, %c0_i32 : i32, i32
  }
  func.func @transform_1(%arg0: i32) -> (i32, i32) {
    %c0_i32 = arith.constant 0 : i32
    %c0_i32_0 = arith.constant 0 : i32
    %c0_i32_1 = arith.constant 0 : i32
    return %c0_i32, %c0_i32_0 : i32, i32
  }
  func.func @transform_2(%arg0: i32) -> (i32, i32) {
    %c0_i32 = arith.constant 0 : i32
    %c0_i32_0 = arith.constant 0 : i32
    %c0_i32_1 = arith.constant 0 : i32
    return %c0_i32, %c0_i32_0 : i32, i32
  }
  func.func @transform_3(%arg0: i32) -> (i32, i32) {
    %c0_i32 = arith.constant 0 : i32
    %c0_i32_0 = arith.constant 0 : i32
    return %arg0, %c0_i32 : i32, i32
  }
}

module attributes {stable_mosaic.version = 11 : i64} {
  func.func @_attn_kernel(%arg0: i32, %arg1: i32, %arg2: memref<1x4x16x8xf32, #tpu.memory_space<vmem>>, %arg3: memref<1x4x16x8xf32, #tpu.memory_space<vmem>>, %arg4: memref<1x4x16x8xf32, #tpu.memory_space<vmem>>, %arg5: memref<4x16x16xf32, #tpu.memory_space<vmem>>, %arg6: memref<1x16x32xf32, #tpu.memory_space<vmem>>, %arg7: memref<4x8x32xf32, #tpu.memory_space<vmem>>, %arg8: memref<1x32xf32, #tpu.memory_space<vmem>>, %arg9: memref<1x32xf32, #tpu.memory_space<vmem>>, %arg10: memref<1x32xf32, #tpu.memory_space<vmem>>, %arg11: memref<1x32xf32, #tpu.memory_space<vmem>>, %arg12: memref<1x32xf32, #tpu.memory_space<vmem>>, %arg13: memref<1x16x32xf32, #tpu.memory_space<vmem>>) attributes {dimension_semantics = [#tpu.dimension_semantics<parallel>, #tpu.dimension_semantics<parallel>], iteration_bounds = array<i64: 2, 1>, scalar_prefetch = 0 : i64, scratch_operands = 0 : i64, tpu.core_type = #tpu.core_type<tc>, window_params = [{transform_indices = @transform_0, window_bounds = array<i64: 1, 4, 16, 8>}, {transform_indices = @transform_1, window_bounds = array<i64: 1, 4, 16, 8>}, {transform_indices = @transform_2, window_bounds = array<i64: 1, 4, 16, 8>}, {transform_indices = @transform_3, window_bounds = array<i64: 4, 16, 16>}, {transform_indices = @transform_4, window_bounds = array<i64: 1, 16, 32>}, {pipeline_mode = #tpu.pipeline_mode<synchronous>, transform_indices = @transform_5, window_bounds = array<i64: 4, 8, 32>}, {pipeline_mode = #tpu.pipeline_mode<synchronous>, transform_indices = @transform_6, window_bounds = array<i64: 1, 32>}, {pipeline_mode = #tpu.pipeline_mode<synchronous>, transform_indices = @transform_7, window_bounds = array<i64: 1, 32>}, {pipeline_mode = #tpu.pipeline_mode<synchronous>, transform_indices = @transform_8, window_bounds = array<i64: 1, 32>}, {pipeline_mode = #tpu.pipeline_mode<synchronous>, transform_indices = @transform_9, window_bounds = array<i64: 1, 32>}, {pipeline_mode = #tpu.pipeline_mode<synchronous>, transform_indices = @transform_10, window_bounds = array<i64: 1, 32>}, {transform_indices = @transform_11, window_bounds = array<i64: 1, 16, 32>}]} {
    %c0 = arith.constant 0 : index
    %c0_0 = arith.constant 0 : index
    %c0_1 = arith.constant 0 : index
    %c0_2 = arith.constant 0 : index
    %0 = vector.load %arg2[%c0, %c0_0, %c0_1, %c0_2] : memref<1x4x16x8xf32, #tpu.memory_space<vmem>>, vector<1x4x16x8xf32>
    %1 = vector.shape_cast %0 : vector<1x4x16x8xf32> to vector<4x16x8xf32>
    %c0_3 = arith.constant 0 : index
    %c0_4 = arith.constant 0 : index
    %c0_5 = arith.constant 0 : index
    %c0_6 = arith.constant 0 : index
    %2 = vector.load %arg3[%c0_3, %c0_4, %c0_5, %c0_6] : memref<1x4x16x8xf32, #tpu.memory_space<vmem>>, vector<1x4x16x8xf32>
    %3 = vector.shape_cast %2 : vector<1x4x16x8xf32> to vector<4x16x8xf32>
    %c0_7 = arith.constant 0 : index
    %c0_8 = arith.constant 0 : index
    %c0_9 = arith.constant 0 : index
    %c0_10 = arith.constant 0 : index
    %4 = vector.load %arg4[%c0_7, %c0_8, %c0_9, %c0_10] : memref<1x4x16x8xf32, #tpu.memory_space<vmem>>, vector<1x4x16x8xf32>
    %5 = vector.shape_cast %4 : vector<1x4x16x8xf32> to vector<4x16x8xf32>
    "tpu.trace_start"() <{level = 10 : i32, message = "hqd,hkd->hqk"}> : () -> ()
    %cst = arith.constant dense<0.000000e+00> : vector<4x16x16xf32>
    %6 = tpu.matmul %1, %3, %cst {dimension_numbers = #tpu.dot_dimension_numbers<[2], [2], [1], [1], [0, 0, 0, 1, 1, 1], [0], [0]>} : vector<4x16x8xf32>, vector<4x16x8xf32>, vector<4x16x16xf32> -> vector<4x16x16xf32>
    "tpu.trace_stop"() : () -> ()
    %c0_11 = arith.constant 0 : index
    %c0_12 = arith.constant 0 : index
    %c0_13 = arith.constant 0 : index
    %7 = vector.load %arg5[%c0_11, %c0_12, %c0_13] : memref<4x16x16xf32, #tpu.memory_space<vmem>>, vector<4x16x16xf32>
    %8 = arith.subf %6, %7 : vector<4x16x16xf32>
    %cst_14 = arith.constant dense<0xFF800000> : vector<4x16xf32>
    %9 = vector.multi_reduction <maximumf>, %8, %cst_14 [2] : vector<4x16x16xf32> to vector<4x16xf32>
    %10 = vector.shape_cast %9 : vector<4x16xf32> to vector<4x16x1xf32>
    %11 = vector.broadcast %10 : vector<4x16x1xf32> to vector<4x16x16xf32>
    %12 = arith.subf %8, %11 : vector<4x16x16xf32>
    %13 = math.exp %12 : vector<4x16x16xf32>
    %cst_15 = arith.constant dense<0.000000e+00> : vector<4x16xf32>
    %14 = vector.multi_reduction <add>, %13, %cst_15 [2] : vector<4x16x16xf32> to vector<4x16xf32>
    %15 = vector.shape_cast %14 : vector<4x16xf32> to vector<4x16x1xf32>
    %16 = tpu.reciprocal %15 {approx = true} : vector<4x16x1xf32> -> vector<4x16x1xf32>
    %17 = vector.broadcast %16 : vector<4x16x1xf32> to vector<4x16x16xf32>
    %18 = arith.mulf %13, %17 : vector<4x16x16xf32>
    "tpu.trace_start"() <{level = 10 : i32, message = "hqk,hkd->hqd"}> : () -> ()
    %cst_16 = arith.constant dense<0.000000e+00> : vector<4x16x8xf32>
    %19 = tpu.matmul %18, %5, %cst_16 {dimension_numbers = #tpu.dot_dimension_numbers<[2], [1], [1], [2], [0, 0, 0, 1, 1, 2], [0], [0]>} : vector<4x16x16xf32>, vector<4x16x8xf32>, vector<4x16x8xf32> -> vector<4x16x8xf32>
    "tpu.trace_stop"() : () -> ()
    %c0_17 = arith.constant 0 : index
    %c0_18 = arith.constant 0 : index
    %c0_19 = arith.constant 0 : index
    %20 = vector.load %arg7[%c0_17, %c0_18, %c0_19] : memref<4x8x32xf32, #tpu.memory_space<vmem>>, vector<4x8x32xf32>
    "tpu.trace_start"() <{level = 10 : i32, message = "hqd,hdm->hqm"}> : () -> ()
    %cst_20 = arith.constant dense<0.000000e+00> : vector<4x16x32xf32>
    %21 = tpu.matmul %19, %20, %cst_20 {dimension_numbers = #tpu.dot_dimension_numbers<[2], [1], [1], [2], [0, 0, 0, 1, 1, 2], [0], [0]>} : vector<4x16x8xf32>, vector<4x8x32xf32>, vector<4x16x32xf32> -> vector<4x16x32xf32>
    "tpu.trace_stop"() : () -> ()
    %cst_21 = arith.constant dense<0.000000e+00> : vector<16x32xf32>
    %22 = vector.multi_reduction <add>, %21, %cst_21 [0] : vector<4x16x32xf32> to vector<16x32xf32>
    %c0_22 = arith.constant 0 : index
    %c0_23 = arith.constant 0 : index
    %23 = vector.load %arg8[%c0_22, %c0_23] : memref<1x32xf32, #tpu.memory_space<vmem>>, vector<1x32xf32>
    %24 = vector.broadcast %23 : vector<1x32xf32> to vector<16x32xf32>
    %25 = arith.addf %22, %24 : vector<16x32xf32>
    %c0_24 = arith.constant 0 : index
    %c0_25 = arith.constant 0 : index
    %c0_26 = arith.constant 0 : index
    %26 = vector.load %arg6[%c0_24, %c0_25, %c0_26] : memref<1x16x32xf32, #tpu.memory_space<vmem>>, vector<1x16x32xf32>
    %27 = vector.shape_cast %26 : vector<1x16x32xf32> to vector<16x32xf32>
    %28 = arith.addf %27, %25 : vector<16x32xf32>
    %cst_27 = arith.constant dense<0.000000e+00> : vector<16xf32>
    %29 = vector.multi_reduction <add>, %28, %cst_27 [1] : vector<16x32xf32> to vector<16xf32>
    %30 = vector.shape_cast %29 : vector<16xf32> to vector<16x1xf32>
    %cst_28 = arith.constant 3.200000e+01 : f32
    %31 = vector.broadcast %cst_28 : f32 to vector<16x1xf32>
    %32 = arith.divf %30, %31 : vector<16x1xf32>
    %33 = vector.broadcast %32 : vector<16x1xf32> to vector<16x32xf32>
    %34 = arith.subf %28, %33 : vector<16x32xf32>
    %35 = arith.mulf %34, %34 : vector<16x32xf32>
    %cst_29 = arith.constant dense<0.000000e+00> : vector<16xf32>
    %36 = vector.multi_reduction <add>, %35, %cst_29 [1] : vector<16x32xf32> to vector<16xf32>
    %37 = vector.shape_cast %36 : vector<16xf32> to vector<16x1xf32>
    %cst_30 = arith.constant 3.200000e+01 : f32
    %38 = vector.broadcast %cst_30 : f32 to vector<16x1xf32>
    %39 = arith.divf %37, %38 : vector<16x1xf32>
    %40 = vector.broadcast %32 : vector<16x1xf32> to vector<16x32xf32>
    %41 = arith.subf %28, %40 : vector<16x32xf32>
    %cst_31 = arith.constant 9.99999974E-6 : f32
    %42 = vector.broadcast %cst_31 : f32 to vector<16x1xf32>
    %43 = arith.addf %39, %42 : vector<16x1xf32>
    %44 = math.rsqrt %43 : vector<16x1xf32>
    %45 = vector.broadcast %44 : vector<16x1xf32> to vector<16x32xf32>
    %46 = arith.mulf %41, %45 : vector<16x32xf32>
    %c0_32 = arith.constant 0 : index
    %c0_33 = arith.constant 0 : index
    %47 = vector.load %arg9[%c0_32, %c0_33] : memref<1x32xf32, #tpu.memory_space<vmem>>, vector<1x32xf32>
    %48 = vector.broadcast %47 : vector<1x32xf32> to vector<16x32xf32>
    %49 = arith.mulf %46, %48 : vector<16x32xf32>
    %c0_34 = arith.constant 0 : index
    %c0_35 = arith.constant 0 : index
    %50 = vector.load %arg10[%c0_34, %c0_35] : memref<1x32xf32, #tpu.memory_space<vmem>>, vector<1x32xf32>
    %51 = vector.broadcast %50 : vector<1x32xf32> to vector<16x32xf32>
    %52 = arith.addf %49, %51 : vector<16x32xf32>
    %53 = arith.addf %27, %52 : vector<16x32xf32>
    %cst_36 = arith.constant dense<0.000000e+00> : vector<16xf32>
    %54 = vector.multi_reduction <add>, %53, %cst_36 [1] : vector<16x32xf32> to vector<16xf32>
    %55 = vector.shape_cast %54 : vector<16xf32> to vector<16x1xf32>
    %cst_37 = arith.constant 3.200000e+01 : f32
    %56 = vector.broadcast %cst_37 : f32 to vector<16x1xf32>
    %57 = arith.divf %55, %56 : vector<16x1xf32>
    %58 = vector.broadcast %57 : vector<16x1xf32> to vector<16x32xf32>
    %59 = arith.subf %53, %58 : vector<16x32xf32>
    %60 = arith.mulf %59, %59 : vector<16x32xf32>
    %cst_38 = arith.constant dense<0.000000e+00> : vector<16xf32>
    %61 = vector.multi_reduction <add>, %60, %cst_38 [1] : vector<16x32xf32> to vector<16xf32>
    %62 = vector.shape_cast %61 : vector<16xf32> to vector<16x1xf32>
    %cst_39 = arith.constant 3.200000e+01 : f32
    %63 = vector.broadcast %cst_39 : f32 to vector<16x1xf32>
    %64 = arith.divf %62, %63 : vector<16x1xf32>
    %65 = vector.broadcast %57 : vector<16x1xf32> to vector<16x32xf32>
    %66 = arith.subf %53, %65 : vector<16x32xf32>
    %cst_40 = arith.constant 9.99999974E-6 : f32
    %67 = vector.broadcast %cst_40 : f32 to vector<16x1xf32>
    %68 = arith.addf %64, %67 : vector<16x1xf32>
    %69 = math.rsqrt %68 : vector<16x1xf32>
    %70 = vector.broadcast %69 : vector<16x1xf32> to vector<16x32xf32>
    %71 = arith.mulf %66, %70 : vector<16x32xf32>
    %c0_41 = arith.constant 0 : index
    %c0_42 = arith.constant 0 : index
    %72 = vector.load %arg11[%c0_41, %c0_42] : memref<1x32xf32, #tpu.memory_space<vmem>>, vector<1x32xf32>
    %73 = vector.broadcast %72 : vector<1x32xf32> to vector<16x32xf32>
    %74 = arith.mulf %71, %73 : vector<16x32xf32>
    %c0_43 = arith.constant 0 : index
    %c0_44 = arith.constant 0 : index
    %75 = vector.load %arg12[%c0_43, %c0_44] : memref<1x32xf32, #tpu.memory_space<vmem>>, vector<1x32xf32>
    %76 = vector.broadcast %75 : vector<1x32xf32> to vector<16x32xf32>
    %77 = arith.addf %74, %76 : vector<16x32xf32>
    %c0_45 = arith.constant 0 : index
    %c0_46 = arith.constant 0 : index
    %c0_47 = arith.constant 0 : index
    %78 = vector.load %arg13[%c0_45, %c0_46, %c0_47] : memref<1x16x32xf32, #tpu.memory_space<vmem>>, vector<1x16x32xf32>
    %79 = vector.shape_cast %78 : vector<1x16x32xf32> to vector<16x32xf32>
    %80 = vector.shape_cast %77 : vector<16x32xf32> to vector<1x16x32xf32>
    tpu.vector_store %arg13[%c0_45, %c0_46, %c0_47], %80 {strides = array<i32>} : memref<1x16x32xf32, #tpu.memory_space<vmem>>, vector<1x16x32xf32>,
    return
  }
  func.func @transform_0(%arg0: i32, %arg1: i32) -> (i32, i32, i32, i32) {
    %c0_i32 = arith.constant 0 : i32
    %c0_i32_0 = arith.constant 0 : i32
    %c0_i32_1 = arith.constant 0 : i32
    return %arg0, %c0_i32, %arg1, %c0_i32_0 : i32, i32, i32, i32
  }
  func.func @transform_1(%arg0: i32, %arg1: i32) -> (i32, i32, i32, i32) {
    %c0_i32 = arith.constant 0 : i32
    %c0_i32_0 = arith.constant 0 : i32
    %c0_i32_1 = arith.constant 0 : i32
    %c0_i32_2 = arith.constant 0 : i32
    return %arg0, %c0_i32, %c0_i32_0, %c0_i32_1 : i32, i32, i32, i32
  }
  func.func @transform_2(%arg0: i32, %arg1: i32) -> (i32, i32, i32, i32) {
    %c0_i32 = arith.constant 0 : i32
    %c0_i32_0 = arith.constant 0 : i32
    %c0_i32_1 = arith.constant 0 : i32
    %c0_i32_2 = arith.constant 0 : i32
    return %arg0, %c0_i32, %c0_i32_0, %c0_i32_1 : i32, i32, i32, i32
  }
  func.func @transform_3(%arg0: i32, %arg1: i32) -> (i32, i32, i32) {
    %c0_i32 = arith.constant 0 : i32
    %c0_i32_0 = arith.constant 0 : i32
    %c0_i32_1 = arith.constant 0 : i32
    return %c0_i32, %arg1, %c0_i32_0 : i32, i32, i32
  }
  func.func @transform_4(%arg0: i32, %arg1: i32) -> (i32, i32, i32) {
    %c0_i32 = arith.constant 0 : i32
    %c0_i32_0 = arith.constant 0 : i32
    return %arg0, %arg1, %c0_i32 : i32, i32, i32
  }
  func.func @transform_5(%arg0: i32, %arg1: i32) -> (i32, i32, i32) {
    %c0_i32 = arith.constant 0 : i32
    %c0_i32_0 = arith.constant 0 : i32
    %c0_i32_1 = arith.constant 0 : i32
    %c0_i32_2 = arith.constant 0 : i32
    return %c0_i32, %c0_i32_0, %c0_i32_1 : i32, i32, i32
  }
  func.func @transform_6(%arg0: i32, %arg1: i32) -> (i32, i32) {
    %c0_i32 = arith.constant 0 : i32
    %c0_i32_0 = arith.constant 0 : i32
    %c0_i32_1 = arith.constant 0 : i32
    return %c0_i32, %c0_i32_0 : i32, i32
  }
  func.func @transform_7(%arg0: i32, %arg1: i32) -> (i32, i32) {
    %c0_i32 = arith.constant 0 : i32
    %c0_i32_0 = arith.constant 0 : i32
    %c0_i32_1 = arith.constant 0 : i32
    return %c0_i32, %c0_i32_0 : i32, i32
  }
  func.func @transform_8(%arg0: i32, %arg1: i32) -> (i32, i32) {
    %c0_i32 = arith.constant 0 : i32
    %c0_i32_0 = arith.constant 0 : i32
    %c0_i32_1 = arith.constant 0 : i32
    return %c0_i32, %c0_i32_0 : i32, i32
  }
  func.func @transform_9(%arg0: i32, %arg1: i32) -> (i32, i32) {
    %c0_i32 = arith.constant 0 : i32
    %c0_i32_0 = arith.constant 0 : i32
    %c0_i32_1 = arith.constant 0 : i32
    return %c0_i32, %c0_i32_0 : i32, i32
  }
  func.func @transform_10(%arg0: i32, %arg1: i32) -> (i32, i32) {
    %c0_i32 = arith.constant 0 : i32
    %c0_i32_0 = arith.constant 0 : i32
    %c0_i32_1 = arith.constant 0 : i32
    return %c0_i32, %c0_i32_0 : i32, i32
  }
  func.func @transform_11(%arg0: i32, %arg1: i32) -> (i32, i32, i32) {
    %c0_i32 = arith.constant 0 : i32
    %c0_i32_0 = arith.constant 0 : i32
    return %arg0, %arg1, %c0_i32 : i32, i32, i32
  }
}

module attributes {stable_mosaic.version = 11 : i64} {
  func.func @_ffn_kernel(%arg0: i32, %arg1: memref<32x32xf32, #tpu.memory_space<vmem>>, %arg2: memref<32x64xf32, #tpu.memory_space<vmem>>, %arg3: memref<1x64xf32, #tpu.memory_space<vmem>>, %arg4: memref<64x32xf32, #tpu.memory_space<vmem>>, %arg5: memref<1x32xf32, #tpu.memory_space<vmem>>, %arg6: memref<1x32xf32, #tpu.memory_space<vmem>>, %arg7: memref<1x32xf32, #tpu.memory_space<vmem>>, %arg8: memref<32x32xf32, #tpu.memory_space<vmem>>, %arg9: memref<32x64xf32, #tpu.memory_space<vmem>>) attributes {dimension_semantics = [#tpu.dimension_semantics<parallel>], iteration_bounds = array<i64: 1>, scalar_prefetch = 0 : i64, scratch_operands = 1 : i64, tpu.core_type = #tpu.core_type<tc>, window_params = [{transform_indices = @transform_0, window_bounds = array<i64: 32, 32>}, {pipeline_mode = #tpu.pipeline_mode<synchronous>, transform_indices = @transform_1, window_bounds = array<i64: 32, 64>}, {pipeline_mode = #tpu.pipeline_mode<synchronous>, transform_indices = @transform_2, window_bounds = array<i64: 1, 64>}, {pipeline_mode = #tpu.pipeline_mode<synchronous>, transform_indices = @transform_3, window_bounds = array<i64: 64, 32>}, {pipeline_mode = #tpu.pipeline_mode<synchronous>, transform_indices = @transform_4, window_bounds = array<i64: 1, 32>}, {pipeline_mode = #tpu.pipeline_mode<synchronous>, transform_indices = @transform_5, window_bounds = array<i64: 1, 32>}, {pipeline_mode = #tpu.pipeline_mode<synchronous>, transform_indices = @transform_6, window_bounds = array<i64: 1, 32>}, {transform_indices = @transform_7, window_bounds = array<i64: 32, 32>}]} {
    %c0 = arith.constant 0 : index
    %c0_0 = arith.constant 0 : index
    %0 = vector.load %arg1[%c0, %c0_0] : memref<32x32xf32, #tpu.memory_space<vmem>>, vector<32x32xf32>
    %c0_1 = arith.constant 0 : index
    %c0_2 = arith.constant 0 : index
    %1 = vector.load %arg2[%c0_1, %c0_2] : memref<32x64xf32, #tpu.memory_space<vmem>>, vector<32x64xf32>
    %cst = arith.constant dense<0.000000e+00> : vector<32x64xf32>
    %2 = tpu.matmul %0, %1, %cst {dimension_numbers = #tpu.dot_dimension_numbers<[1], [0], [0], [1], [0, 0, 1, 1], [], []>} : vector<32x32xf32>, vector<32x64xf32>, vector<32x64xf32> -> vector<32x64xf32>
    %c0_3 = arith.constant 0 : index
    %c0_4 = arith.constant 0 : index
    %3 = vector.load %arg3[%c0_3, %c0_4] : memref<1x64xf32, #tpu.memory_space<vmem>>, vector<1x64xf32>
    %4 = vector.broadcast %3 : vector<1x64xf32> to vector<32x64xf32>
    %5 = arith.addf %2, %4 : vector<32x64xf32>
    %cst_5 = arith.constant 0.000000e+00 : f32
    %6 = vector.broadcast %cst_5 : f32 to vector<32x64xf32>
    %7 = arith.maximumf %5, %6 : vector<32x64xf32>
    %c0_6 = arith.constant 0 : index
    %c0_7 = arith.constant 0 : index
    %8 = vector.load %arg9[%c0_6, %c0_7] : memref<32x64xf32, #tpu.memory_space<vmem>>, vector<32x64xf32>
    tpu.vector_store %arg9[%c0_6, %c0_7], %7 {strides = array<i32>} : memref<32x64xf32, #tpu.memory_space<vmem>>, vector<32x64xf32>,
    %c0_8 = arith.constant 0 : index
    %c0_9 = arith.constant 0 : index
    %9 = vector.load %arg9[%c0_8, %c0_9] : memref<32x64xf32, #tpu.memory_space<vmem>>, vector<32x64xf32>
    %c0_10 = arith.constant 0 : index
    %c0_11 = arith.constant 0 : index
    %10 = vector.load %arg4[%c0_10, %c0_11] : memref<64x32xf32, #tpu.memory_space<vmem>>, vector<64x32xf32>
    %cst_12 = arith.constant dense<0.000000e+00> : vector<32x32xf32>
    %11 = tpu.matmul %9, %10, %cst_12 {dimension_numbers = #tpu.dot_dimension_numbers<[1], [0], [0], [1], [0, 0, 1, 1], [], []>} : vector<32x64xf32>, vector<64x32xf32>, vector<32x32xf32> -> vector<32x32xf32>
    %c0_13 = arith.constant 0 : index
    %c0_14 = arith.constant 0 : index
    %12 = vector.load %arg5[%c0_13, %c0_14] : memref<1x32xf32, #tpu.memory_space<vmem>>, vector<1x32xf32>
    %13 = vector.broadcast %12 : vector<1x32xf32> to vector<32x32xf32>
    %14 = arith.addf %11, %13 : vector<32x32xf32>
    %c0_15 = arith.constant 0 : index
    %c0_16 = arith.constant 0 : index
    %15 = vector.load %arg1[%c0_15, %c0_16] : memref<32x32xf32, #tpu.memory_space<vmem>>, vector<32x32xf32>
    %16 = arith.addf %15, %14 : vector<32x32xf32>
    %cst_17 = arith.constant dense<0.000000e+00> : vector<32xf32>
    %17 = vector.multi_reduction <add>, %16, %cst_17 [1] : vector<32x32xf32> to vector<32xf32>
    %18 = vector.shape_cast %17 : vector<32xf32> to vector<32x1xf32>
    %cst_18 = arith.constant 3.200000e+01 : f32
    %19 = vector.broadcast %cst_18 : f32 to vector<32x1xf32>
    %20 = arith.divf %18, %19 : vector<32x1xf32>
    %21 = vector.broadcast %20 : vector<32x1xf32> to vector<32x32xf32>
    %22 = arith.subf %16, %21 : vector<32x32xf32>
    %23 = arith.mulf %22, %22 : vector<32x32xf32>
    %cst_19 = arith.constant dense<0.000000e+00> : vector<32xf32>
    %24 = vector.multi_reduction <add>, %23, %cst_19 [1] : vector<32x32xf32> to vector<32xf32>
    %25 = vector.shape_cast %24 : vector<32xf32> to vector<32x1xf32>
    %cst_20 = arith.constant 3.200000e+01 : f32
    %26 = vector.broadcast %cst_20 : f32 to vector<32x1xf32>
    %27 = arith.divf %25, %26 : vector<32x1xf32>
    %28 = vector.broadcast %20 : vector<32x1xf32> to vector<32x32xf32>
    %29 = arith.subf %16, %28 : vector<32x32xf32>
    %cst_21 = arith.constant 9.99999974E-6 : f32
    %30 = vector.broadcast %cst_21 : f32 to vector<32x1xf32>
    %31 = arith.addf %27, %30 : vector<32x1xf32>
    %32 = math.rsqrt %31 : vector<32x1xf32>
    %33 = vector.broadcast %32 : vector<32x1xf32> to vector<32x32xf32>
    %34 = arith.mulf %29, %33 : vector<32x32xf32>
    %c0_22 = arith.constant 0 : index
    %c0_23 = arith.constant 0 : index
    %35 = vector.load %arg6[%c0_22, %c0_23] : memref<1x32xf32, #tpu.memory_space<vmem>>, vector<1x32xf32>
    %36 = vector.broadcast %35 : vector<1x32xf32> to vector<32x32xf32>
    %37 = arith.mulf %34, %36 : vector<32x32xf32>
    %c0_24 = arith.constant 0 : index
    %c0_25 = arith.constant 0 : index
    %38 = vector.load %arg7[%c0_24, %c0_25] : memref<1x32xf32, #tpu.memory_space<vmem>>, vector<1x32xf32>
    %39 = vector.broadcast %38 : vector<1x32xf32> to vector<32x32xf32>
    %40 = arith.addf %37, %39 : vector<32x32xf32>
    %c0_26 = arith.constant 0 : index
    %c0_27 = arith.constant 0 : index
    %41 = vector.load %arg8[%c0_26, %c0_27] : memref<32x32xf32, #tpu.memory_space<vmem>>, vector<32x32xf32>
    tpu.vector_store %arg8[%c0_26, %c0_27], %40 {strides = array<i32>} : memref<32x32xf32, #tpu.memory_space<vmem>>, vector<32x32xf32>,
    return
  }
  func.func @transform_0(%arg0: i32) -> (i32, i32) {
    %c0_i32 = arith.constant 0 : i32
    %c0_i32_0 = arith.constant 0 : i32
    return %arg0, %c0_i32 : i32, i32
  }
  func.func @transform_1(%arg0: i32) -> (i32, i32) {
    %c0_i32 = arith.constant 0 : i32
    %c0_i32_0 = arith.constant 0 : i32
    %c0_i32_1 = arith.constant 0 : i32
    return %c0_i32, %c0_i32_0 : i32, i32
  }
  func.func @transform_2(%arg0: i32) -> (i32, i32) {
    %c0_i32 = arith.constant 0 : i32
    %c0_i32_0 = arith.constant 0 : i32
    %c0_i32_1 = arith.constant 0 : i32
    return %c0_i32, %c0_i32_0 : i32, i32
  }
  func.func @transform_3(%arg0: i32) -> (i32, i32) {
    %c0_i32 = arith.constant 0 : i32
    %c0_i32_0 = arith.constant 0 : i32
    %c0_i32_1 = arith.constant 0 : i32
    return %c0_i32, %c0_i32_0 : i32, i32
  }
  func.func @transform_4(%arg0: i32) -> (i32, i32) {
    %c0_i32 = arith.constant 0 : i32
    %c0_i32_0 = arith.constant 0 : i32
    %c0_i32_1 = arith.constant 0 : i32
    return %c0_i32, %c0_i32_0 : i32, i32
  }
  func.func @transform_5(%arg0: i32) -> (i32, i32) {
    %c0_i32 = arith.constant 0 : i32
    %c0_i32_0 = arith.constant 0 : i32
    %c0_i32_1 = arith.constant 0 : i32
    return %c0_i32, %c0_i32_0 : i32, i32
  }
  func.func @transform_6(%arg0: i32) -> (i32, i32) {
    %c0_i32 = arith.constant 0 : i32
    %c0_i32_0 = arith.constant 0 : i32
    %c0_i32_1 = arith.constant 0 : i32
    return %c0_i32, %c0_i32_0 : i32, i32
  }
  func.func @transform_7(%arg0: i32) -> (i32, i32) {
    %c0_i32 = arith.constant 0 : i32
    %c0_i32_0 = arith.constant 0 : i32
    return %arg0, %c0_i32 : i32, i32
  }
}

module attributes {stable_mosaic.version = 11 : i64} {
  func.func @_ffn_kernel(%arg0: i32, %arg1: memref<32x32xf32, #tpu.memory_space<vmem>>, %arg2: memref<32x64xf32, #tpu.memory_space<vmem>>, %arg3: memref<1x64xf32, #tpu.memory_space<vmem>>, %arg4: memref<64x32xf32, #tpu.memory_space<vmem>>, %arg5: memref<1x32xf32, #tpu.memory_space<vmem>>, %arg6: memref<1x32xf32, #tpu.memory_space<vmem>>, %arg7: memref<1x32xf32, #tpu.memory_space<vmem>>, %arg8: memref<32x32xf32, #tpu.memory_space<vmem>>, %arg9: memref<32x64xf32, #tpu.memory_space<vmem>>) attributes {dimension_semantics = [#tpu.dimension_semantics<parallel>], iteration_bounds = array<i64: 1>, scalar_prefetch = 0 : i64, scratch_operands = 1 : i64, tpu.core_type = #tpu.core_type<tc>, window_params = [{transform_indices = @transform_0, window_bounds = array<i64: 32, 32>}, {pipeline_mode = #tpu.pipeline_mode<synchronous>, transform_indices = @transform_1, window_bounds = array<i64: 32, 64>}, {pipeline_mode = #tpu.pipeline_mode<synchronous>, transform_indices = @transform_2, window_bounds = array<i64: 1, 64>}, {pipeline_mode = #tpu.pipeline_mode<synchronous>, transform_indices = @transform_3, window_bounds = array<i64: 64, 32>}, {pipeline_mode = #tpu.pipeline_mode<synchronous>, transform_indices = @transform_4, window_bounds = array<i64: 1, 32>}, {pipeline_mode = #tpu.pipeline_mode<synchronous>, transform_indices = @transform_5, window_bounds = array<i64: 1, 32>}, {pipeline_mode = #tpu.pipeline_mode<synchronous>, transform_indices = @transform_6, window_bounds = array<i64: 1, 32>}, {transform_indices = @transform_7, window_bounds = array<i64: 32, 32>}]} {
    %c0 = arith.constant 0 : index
    %c0_0 = arith.constant 0 : index
    %0 = vector.load %arg1[%c0, %c0_0] : memref<32x32xf32, #tpu.memory_space<vmem>>, vector<32x32xf32>
    %c0_1 = arith.constant 0 : index
    %c0_2 = arith.constant 0 : index
    %1 = vector.load %arg2[%c0_1, %c0_2] : memref<32x64xf32, #tpu.memory_space<vmem>>, vector<32x64xf32>
    %cst = arith.constant dense<0.000000e+00> : vector<32x64xf32>
    %2 = tpu.matmul %0, %1, %cst {dimension_numbers = #tpu.dot_dimension_numbers<[1], [0], [0], [1], [0, 0, 1, 1], [], []>} : vector<32x32xf32>, vector<32x64xf32>, vector<32x64xf32> -> vector<32x64xf32>
    %c0_3 = arith.constant 0 : index
    %c0_4 = arith.constant 0 : index
    %3 = vector.load %arg3[%c0_3, %c0_4] : memref<1x64xf32, #tpu.memory_space<vmem>>, vector<1x64xf32>
    %4 = vector.broadcast %3 : vector<1x64xf32> to vector<32x64xf32>
    %5 = arith.addf %2, %4 : vector<32x64xf32>
    %cst_5 = arith.constant 0.000000e+00 : f32
    %6 = vector.broadcast %cst_5 : f32 to vector<32x64xf32>
    %7 = arith.maximumf %5, %6 : vector<32x64xf32>
    %c0_6 = arith.constant 0 : index
    %c0_7 = arith.constant 0 : index
    %8 = vector.load %arg9[%c0_6, %c0_7] : memref<32x64xf32, #tpu.memory_space<vmem>>, vector<32x64xf32>
    tpu.vector_store %arg9[%c0_6, %c0_7], %7 {strides = array<i32>} : memref<32x64xf32, #tpu.memory_space<vmem>>, vector<32x64xf32>,
    %c0_8 = arith.constant 0 : index
    %c0_9 = arith.constant 0 : index
    %9 = vector.load %arg9[%c0_8, %c0_9] : memref<32x64xf32, #tpu.memory_space<vmem>>, vector<32x64xf32>
    %c0_10 = arith.constant 0 : index
    %c0_11 = arith.constant 0 : index
    %10 = vector.load %arg4[%c0_10, %c0_11] : memref<64x32xf32, #tpu.memory_space<vmem>>, vector<64x32xf32>
    %cst_12 = arith.constant dense<0.000000e+00> : vector<32x32xf32>
    %11 = tpu.matmul %9, %10, %cst_12 {dimension_numbers = #tpu.dot_dimension_numbers<[1], [0], [0], [1], [0, 0, 1, 1], [], []>} : vector<32x64xf32>, vector<64x32xf32>, vector<32x32xf32> -> vector<32x32xf32>
    %c0_13 = arith.constant 0 : index
    %c0_14 = arith.constant 0 : index
    %12 = vector.load %arg5[%c0_13, %c0_14] : memref<1x32xf32, #tpu.memory_space<vmem>>, vector<1x32xf32>
    %13 = vector.broadcast %12 : vector<1x32xf32> to vector<32x32xf32>
    %14 = arith.addf %11, %13 : vector<32x32xf32>
    %c0_15 = arith.constant 0 : index
    %c0_16 = arith.constant 0 : index
    %15 = vector.load %arg1[%c0_15, %c0_16] : memref<32x32xf32, #tpu.memory_space<vmem>>, vector<32x32xf32>
    %16 = arith.addf %15, %14 : vector<32x32xf32>
    %cst_17 = arith.constant dense<0.000000e+00> : vector<32xf32>
    %17 = vector.multi_reduction <add>, %16, %cst_17 [1] : vector<32x32xf32> to vector<32xf32>
    %18 = vector.shape_cast %17 : vector<32xf32> to vector<32x1xf32>
    %cst_18 = arith.constant 3.200000e+01 : f32
    %19 = vector.broadcast %cst_18 : f32 to vector<32x1xf32>
    %20 = arith.divf %18, %19 : vector<32x1xf32>
    %21 = vector.broadcast %20 : vector<32x1xf32> to vector<32x32xf32>
    %22 = arith.subf %16, %21 : vector<32x32xf32>
    %23 = arith.mulf %22, %22 : vector<32x32xf32>
    %cst_19 = arith.constant dense<0.000000e+00> : vector<32xf32>
    %24 = vector.multi_reduction <add>, %23, %cst_19 [1] : vector<32x32xf32> to vector<32xf32>
    %25 = vector.shape_cast %24 : vector<32xf32> to vector<32x1xf32>
    %cst_20 = arith.constant 3.200000e+01 : f32
    %26 = vector.broadcast %cst_20 : f32 to vector<32x1xf32>
    %27 = arith.divf %25, %26 : vector<32x1xf32>
    %28 = vector.broadcast %20 : vector<32x1xf32> to vector<32x32xf32>
    %29 = arith.subf %16, %28 : vector<32x32xf32>
    %cst_21 = arith.constant 9.99999974E-6 : f32
    %30 = vector.broadcast %cst_21 : f32 to vector<32x1xf32>
    %31 = arith.addf %27, %30 : vector<32x1xf32>
    %32 = math.rsqrt %31 : vector<32x1xf32>
    %33 = vector.broadcast %32 : vector<32x1xf32> to vector<32x32xf32>
    %34 = arith.mulf %29, %33 : vector<32x32xf32>
    %c0_22 = arith.constant 0 : index
    %c0_23 = arith.constant 0 : index
    %35 = vector.load %arg6[%c0_22, %c0_23] : memref<1x32xf32, #tpu.memory_space<vmem>>, vector<1x32xf32>
    %36 = vector.broadcast %35 : vector<1x32xf32> to vector<32x32xf32>
    %37 = arith.mulf %34, %36 : vector<32x32xf32>
    %c0_24 = arith.constant 0 : index
    %c0_25 = arith.constant 0 : index
    %38 = vector.load %arg7[%c0_24, %c0_25] : memref<1x32xf32, #tpu.memory_space<vmem>>, vector<1x32xf32>
    %39 = vector.broadcast %38 : vector<1x32xf32> to vector<32x32xf32>
    %40 = arith.addf %37, %39 : vector<32x32xf32>
    %c0_26 = arith.constant 0 : index
    %c0_27 = arith.constant 0 : index
    %41 = vector.load %arg8[%c0_26, %c0_27] : memref<32x32xf32, #tpu.memory_space<vmem>>, vector<32x32xf32>
    tpu.vector_store %arg8[%c0_26, %c0_27], %40 {strides = array<i32>} : memref<32x32xf32, #tpu.memory_space<vmem>>, vector<32x32xf32>,
    return
  }
  func.func @transform_0(%arg0: i32) -> (i32, i32) {
    %c0_i32 = arith.constant 0 : i32
    %c0_i32_0 = arith.constant 0 : i32
    return %arg0, %c0_i32 : i32, i32
  }
  func.func @transform_1(%arg0: i32) -> (i32, i32) {
    %c0_i32 = arith.constant 0 : i32
    %c0_i32_0 = arith.constant 0 : i32
    %c0_i32_1 = arith.constant 0 : i32
    return %c0_i32, %c0_i32_0 : i32, i32
  }
  func.func @transform_2(%arg0: i32) -> (i32, i32) {
    %c0_i32 = arith.constant 0 : i32
    %c0_i32_0 = arith.constant 0 : i32
    %c0_i32_1 = arith.constant 0 : i32
    return %c0_i32, %c0_i32_0 : i32, i32
  }
  func.func @transform_3(%arg0: i32) -> (i32, i32) {
    %c0_i32 = arith.constant 0 : i32
    %c0_i32_0 = arith.constant 0 : i32
    %c0_i32_1 = arith.constant 0 : i32
    return %c0_i32, %c0_i32_0 : i32, i32
  }
  func.func @transform_4(%arg0: i32) -> (i32, i32) {
    %c0_i32 = arith.constant 0 : i32
    %c0_i32_0 = arith.constant 0 : i32
    %c0_i32_1 = arith.constant 0 : i32
    return %c0_i32, %c0_i32_0 : i32, i32
  }
  func.func @transform_5(%arg0: i32) -> (i32, i32) {
    %c0_i32 = arith.constant 0 : i32
    %c0_i32_0 = arith.constant 0 : i32
    %c0_i32_1 = arith.constant 0 : i32
    return %c0_i32, %c0_i32_0 : i32, i32
  }
  func.func @transform_6(%arg0: i32) -> (i32, i32) {
    %c0_i32 = arith.constant 0 : i32
    %c0_i32_0 = arith.constant 0 : i32
    %c0_i32_1 = arith.constant 0 : i32
    return %c0_i32, %c0_i32_0 : i32, i32
  }
  func.func @transform_7(%arg0: i32) -> (i32, i32) {
    %c0_i32 = arith.constant 0 : i32
    %c0_i32_0 = arith.constant 0 : i32
    return %arg0, %c0_i32 : i32, i32
  }
}

</mosaic_0001>

<llo_original>
// kernel: encoder_forward.8
$region0: #{encoder_forward.8}
  #allocation0 [shape = 'u32[]', space=smem, size = 0x4, offset = 0x4, fixed_abs, tag = 'smem constant byte address 0x4 - core index']
  #allocation1 [shape = 'u32[72,128]{1,0:T(1,128)}', space=vmem, size = 0x9000, scoped, tag = 'internal scratch']
  %s0 = inlined_call_operand.vmem [shape: f32[32,32], index: 0, kind: input, shape index: {}]
  %s1 = inlined_call_operand.vmem [shape: f32[32,96], index: 1, kind: input, shape index: {}]
  %s2 = inlined_call_operand.vmem [shape: f32[1,96], index: 2, kind: input, shape index: {}]
  %s3 = inlined_call_operand.vmem [shape: f32[32,96], index: 3, kind: output, shape index: {}]
  %s4 = sld [smem:[#allocation0]]
  $region22: #{encoder_forward.8} parent=0
    _
  %s6 = ssub.s32 1, %s4
  %s7 = scalar_select 0, %s6, %s4
  // Predicated region
  $region2: #{encoder_forward.8} parent=0 // pred_check
    _
  $region3: #{encoder_forward.8} parent=0 // pred_check_branch
    %9 = sbr.rel (0) target = $region5
  $region4: #{encoder_forward.8} parent=0 // pred_region
    _
  $region5: #{encoder_forward.8} parent=0 // pred_fallthru
    _
  // Predicated region
  $region6: #{encoder_forward.8} parent=0 // pred_check
    _
  $region7: #{encoder_forward.8} parent=0 // pred_check_branch
    %11 = sbr.rel (0) target = $region9
  $region8: #{encoder_forward.8} parent=0 // pred_region
    _
  $region9: #{encoder_forward.8} parent=0 // pred_fallthru
    _
  // Predicated region
  $region10: #{encoder_forward.8} parent=0 // pred_check
    _
  $region11: #{encoder_forward.8} parent=0 // pred_check_branch
    %13 = sbr.rel (0) target = $region13
  $region12: #{encoder_forward.8} parent=0 // pred_region
    _
  $region13: #{encoder_forward.8} parent=0 // pred_fallthru
    _
  %v14 = vld [vmem:[%s0] sm:$0xff]
  %v15 = vld [vmem:[%s0 + $0x8] sm:$0xff]
  %v16 = vld [vmem:[%s0 + $0x10] sm:$0xff]
  %v17 = vld [vmem:[%s0 + $0x18] sm:$0xff]
  %v18 = vld [vmem:[%s1] sm:$0xff]
  %v19 = vld [vmem:[%s1 + $0x8] sm:$0xff]
  %v20 = vld [vmem:[%s1 + $0x10] sm:$0xff]
  %v21 = vld [vmem:[%s1 + $0x18] sm:$0xff]
  %v22 = vld [vmem:[%s2] sm:$0x1]
  %v24 = vperm.slane %v22, 0
  %vm26 = vcmask 261120
  %v28 = vsel %vm26, %v14, 0
  %v31 = vsel %vm26, %v15, 0
  %v34 = vsel %vm26, %v16, 0
  %v37 = vsel %vm26, %v17, 0
  %39 = vmatpush.msra.mxu0 0.0
  %40 = vmatpush.msra.mxu0 0.0
  %41 = vmatpush.msra.mxu0 0.0
  %42 = vmatpush.msra.mxu0 0.0
  %43 = vmatpush.msra.mxu0 0.0
  %44 = vmatpush.msra.mxu0 0.0
  %45 = vmatpush.msra.mxu0 0.0
  %46 = vmatpush.msra.mxu0 0.0
  %47 = vmatpush.msra.mxu0 0.0
  %48 = vmatpush.msra.mxu0 0.0
  %49 = vmatpush.msra.mxu0 0.0
  %50 = vmatpush.msra.mxu0 0.0
  %51 = vmatpush.msra.mxu0 %v21
  %52 = vmatpush.msra.mxu0 %v20
  %53 = vmatpush.msra.mxu0 %v19
  %54 = vmatpush.msra.mxu0 %v18
  %55 = vmatmul.f32.gmra.mxu0 %v28
  %v56 = vpop.f32.mrf.mxu0
  %v57 = vadd.f32 %v24, %v56
  %58 = vmatmul.f32.gmra.mxu0 %v31
  %v59 = vpop.f32.mrf.mxu0
  %v60 = vadd.f32 %v24, %v59
  %61 = vmatmul.f32.gmra.mxu0 %v34
  %v62 = vpop.f32.mrf.mxu0
  %v63 = vadd.f32 %v24, %v62
  %64 = vmatmul.f32.gmra.mxu0 %v37
  %v65 = vpop.f32.mrf.mxu0
  %v66 = vadd.f32 %v24, %v65
  %67 = vdwg.mxu0
  %vm68 = vcmask 785408
  %69 = vst.msk [vmem:[%s3] sm:$0xff] %vm68, %v57
  %70 = vst.msk [vmem:[%s3 + $0x8] sm:$0xff] %vm68, %v60
  %71 = vst.msk [vmem:[%s3 + $0x10] sm:$0xff] %vm68, %v63
  %72 = vst.msk [vmem:[%s3 + $0x18] sm:$0xff] %vm68, %v66
  // Predicated region
  $region14: #{encoder_forward.8} parent=0 // pred_check
    _
  $region15: #{encoder_forward.8} parent=0 // pred_check_branch
    %74 = sbr.rel (0) target = $region17
  $region16: #{encoder_forward.8} parent=0 // pred_region
    _
  $region17: #{encoder_forward.8} parent=0 // pred_fallthru
    _
  // Predicated region
  $region18: #{encoder_forward.8} parent=0 // pred_check
    _
  $region19: #{encoder_forward.8} parent=0 // pred_check_branch
    %76 = sbr.rel (0) target = $region21
  $region20: #{encoder_forward.8} parent=0 // pred_region
    _
  $region21: #{encoder_forward.8} parent=0 // pred_fallthru
    _

// kernel: encoder_forward.7
$region0: #{encoder_forward.7}
  #allocation0 [shape = 'u32[]', space=smem, size = 0x4, offset = 0x4, fixed_abs, tag = 'smem constant byte address 0x4 - core index']
  #allocation1 [shape = 'u32[72,128]{1,0:T(1,128)}', space=vmem, size = 0x9000, scoped, tag = 'internal scratch']
  %s0 = inlined_call_operand.vmem [shape: f32[256,64], index: 0, kind: input, shape index: {}]
  %s1 = inlined_call_operand.vmem [shape: f32[64,4], index: 1, kind: input, shape index: {}]
  %s2 = inlined_call_operand.vmem [shape: f32[1,4], index: 2, kind: input, shape index: {}]
  %s3 = inlined_call_operand.vmem [shape: f32[256,4], index: 3, kind: output, shape index: {}]
  %s4 = sld [smem:[#allocation0]]
  $region22: #{encoder_forward.7} parent=0
    _
  %s6 = ssub.s32 1, %s4
  %s7 = scalar_select 0, %s6, %s4
  // Predicated region
  $region2: #{encoder_forward.7} parent=0 // pred_check
    _
  $region3: #{encoder_forward.7} parent=0 // pred_check_branch
    %9 = sbr.rel (0) target = $region5
  $region4: #{encoder_forward.7} parent=0 // pred_region
    _
  $region5: #{encoder_forward.7} parent=0 // pred_fallthru
    _
  // Predicated region
  $region6: #{encoder_forward.7} parent=0 // pred_check
    _
  $region7: #{encoder_forward.7} parent=0 // pred_check_branch
    %11 = sbr.rel (0) target = $region9
  $region8: #{encoder_forward.7} parent=0 // pred_region
    _
  $region9: #{encoder_forward.7} parent=0 // pred_fallthru
    _
  // Predicated region
  $region10: #{encoder_forward.7} parent=0 // pred_check
    _
  $region11: #{encoder_forward.7} parent=0 // pred_check_branch
    %13 = sbr.rel (0) target = $region13
  $region12: #{encoder_forward.7} parent=0 // pred_region
    _
  $region13: #{encoder_forward.7} parent=0 // pred_fallthru
    _
  %v14 = vld [vmem:[%s0] sm:$0xff]
  %v15 = vld [vmem:[%s0 + $0x8] sm:$0xff]
  %v16 = vld [vmem:[%s0 + $0x10] sm:$0xff]
  %v17 = vld [vmem:[%s0 + $0x18] sm:$0xff]
  %v18 = vld [vmem:[%s0 + $0x20] sm:$0xff]
  %v19 = vld [vmem:[%s0 + $0x28] sm:$0xff]
  %v20 = vld [vmem:[%s0 + $0x30] sm:$0xff]
  %v21 = vld [vmem:[%s0 + $0x38] sm:$0xff]
  %v22 = vld [vmem:[%s0 + $0x40] sm:$0xff]
  %v23 = vld [vmem:[%s0 + $0x48] sm:$0xff]
  %v24 = vld [vmem:[%s0 + $0x50] sm:$0xff]
  %v25 = vld [vmem:[%s0 + $0x58] sm:$0xff]
  %v26 = vld [vmem:[%s0 + $0x60] sm:$0xff]
  %v27 = vld [vmem:[%s0 + $0x68] sm:$0xff]
  %v28 = vld [vmem:[%s0 + $0x70] sm:$0xff]
  %v29 = vld [vmem:[%s0 + $0x78] sm:$0xff]
  %v30 = vld [vmem:[%s0 + $0x80] sm:$0xff]
  %v31 = vld [vmem:[%s0 + $0x88] sm:$0xff]
  %v32 = vld [vmem:[%s0 + $0x90] sm:$0xff]
  %v33 = vld [vmem:[%s0 + $0x98] sm:$0xff]
  %v34 = vld [vmem:[%s0 + $0xa0] sm:$0xff]
  %v35 = vld [vmem:[%s0 + $0xa8] sm:$0xff]
  %v36 = vld [vmem:[%s0 + $0xb0] sm:$0xff]
  %v37 = vld [vmem:[%s0 + $0xb8] sm:$0xff]
  %v38 = vld [vmem:[%s0 + $0xc0] sm:$0xff]
  %v39 = vld [vmem:[%s0 + $0xc8] sm:$0xff]
  %v40 = vld [vmem:[%s0 + $0xd0] sm:$0xff]
  %v41 = vld [vmem:[%s0 + $0xd8] sm:$0xff]
  %v42 = vld [vmem:[%s0 + $0xe0] sm:$0xff]
  %v43 = vld [vmem:[%s0 + $0xe8] sm:$0xff]
  %v44 = vld [vmem:[%s0 + $0xf0] sm:$0xff]
  %v45 = vld [vmem:[%s0 + $0xf8] sm:$0xff]
  %v46 = vld [vmem:[%s1] sm:$0xff]
  %v47 = vld [vmem:[%s1 + $0x8] sm:$0xff]
  %v48 = vld [vmem:[%s1 + $0x10] sm:$0xff]
  %v49 = vld [vmem:[%s1 + $0x18] sm:$0xff]
  %v50 = vld [vmem:[%s1 + $0x20] sm:$0xff]
  %v51 = vld [vmem:[%s1 + $0x28] sm:$0xff]
  %v52 = vld [vmem:[%s1 + $0x30] sm:$0xff]
  %v53 = vld [vmem:[%s1 + $0x38] sm:$0xff]
  %v54 = vld [vmem:[%s2] sm:$0x1]
  %v56 = vperm.slane %v54, 0
  %vm58 = vcmask 523264
  %v60 = vsel %vm58, %v14, 0
  %v63 = vsel %vm58, %v15, 0
  %v66 = vsel %vm58, %v16, 0
  %v69 = vsel %vm58, %v17, 0
  %v72 = vsel %vm58, %v18, 0
  %v75 = vsel %vm58, %v19, 0
  %v78 = vsel %vm58, %v20, 0
  %v81 = vsel %vm58, %v21, 0
  %v84 = vsel %vm58, %v22, 0
  %v87 = vsel %vm58, %v23, 0
  %v90 = vsel %vm58, %v24, 0
  %v93 = vsel %vm58, %v25, 0
  %v96 = vsel %vm58, %v26, 0
  %v99 = vsel %vm58, %v27, 0
  %v102 = vsel %vm58, %v28, 0
  %v105 = vsel %vm58, %v29, 0
  %v108 = vsel %vm58, %v30, 0
  %v111 = vsel %vm58, %v31, 0
  %v114 = vsel %vm58, %v32, 0
  %v117 = vsel %vm58, %v33, 0
  %v120 = vsel %vm58, %v34, 0
  %v123 = vsel %vm58, %v35, 0
  %v126 = vsel %vm58, %v36, 0
  %v129 = vsel %vm58, %v37, 0
  %v132 = vsel %vm58, %v38, 0
  %v135 = vsel %vm58, %v39, 0
  %v138 = vsel %vm58, %v40, 0
  %v141 = vsel %vm58, %v41, 0
  %v144 = vsel %vm58, %v42, 0
  %v147 = vsel %vm58, %v43, 0
  %v150 = vsel %vm58, %v44, 0
  %v153 = vsel %vm58, %v45, 0
  %155 = vmatpush.msra.mxu0 0.0
  %156 = vmatpush.msra.mxu0 0.0
  %157 = vmatpush.msra.mxu0 0.0
  %158 = vmatpush.msra.mxu0 0.0
  %159 = vmatpush.msra.mxu0 0.0
  %160 = vmatpush.msra.mxu0 0.0
  %161 = vmatpush.msra.mxu0 0.0
  %162 = vmatpush.msra.mxu0 0.0
  %163 = vmatpush.msra.mxu0 %v53
  %164 = vmatpush.msra.mxu0 %v52
  %165 = vmatpush.msra.mxu0 %v51
  %166 = vmatpush.msra.mxu0 %v50
  %167 = vmatpush.msra.mxu0 %v49
  %168 = vmatpush.msra.mxu0 %v48
  %169 = vmatpush.msra.mxu0 %v47
  %170 = vmatpush.msra.mxu0 %v46
  %171 = vmatmul.f32.gmra.mxu0 %v60
  %v172 = vpop.f32.mrf.mxu0
  %v173 = vadd.f32 %v56, %v172
  %174 = vmatmul.f32.gmra.mxu0 %v63
  %v175 = vpop.f32.mrf.mxu0
  %v176 = vadd.f32 %v56, %v175
  %177 = vmatmul.f32.gmra.mxu0 %v66
  %v178 = vpop.f32.mrf.mxu0
  %v179 = vadd.f32 %v56, %v178
  %180 = vmatmul.f32.gmra.mxu0 %v69
  %v181 = vpop.f32.mrf.mxu0
  %v182 = vadd.f32 %v56, %v181
  %183 = vmatmul.f32.gmra.mxu0 %v72
  %v184 = vpop.f32.mrf.mxu0
  %v185 = vadd.f32 %v56, %v184
  %186 = vmatmul.f32.gmra.mxu0 %v75
  %v187 = vpop.f32.mrf.mxu0
  %v188 = vadd.f32 %v56, %v187
  %189 = vmatmul.f32.gmra.mxu0 %v78
  %v190 = vpop.f32.mrf.mxu0
  %v191 = vadd.f32 %v56, %v190
  %192 = vmatmul.f32.gmra.mxu0 %v81
  %v193 = vpop.f32.mrf.mxu0
  %v194 = vadd.f32 %v56, %v193
  %195 = vmatmul.f32.gmra.mxu0 %v84
  %v196 = vpop.f32.mrf.mxu0
  %v197 = vadd.f32 %v56, %v196
  %198 = vmatmul.f32.gmra.mxu0 %v87
  %v199 = vpop.f32.mrf.mxu0
  %v200 = vadd.f32 %v56, %v199
  %201 = vmatmul.f32.gmra.mxu0 %v90
  %v202 = vpop.f32.mrf.mxu0
  %v203 = vadd.f32 %v56, %v202
  %204 = vmatmul.f32.gmra.mxu0 %v93
  %v205 = vpop.f32.mrf.mxu0
  %v206 = vadd.f32 %v56, %v205
  %207 = vmatmul.f32.gmra.mxu0 %v96
  %v208 = vpop.f32.mrf.mxu0
  %v209 = vadd.f32 %v56, %v208
  %210 = vmatmul.f32.gmra.mxu0 %v99
  %v211 = vpop.f32.mrf.mxu0
  %v212 = vadd.f32 %v56, %v211
  %213 = vmatmul.f32.gmra.mxu0 %v102
  %v214 = vpop.f32.mrf.mxu0
  %v215 = vadd.f32 %v56, %v214
  %216 = vmatmul.f32.gmra.mxu0 %v105
  %v217 = vpop.f32.mrf.mxu0
  %v218 = vadd.f32 %v56, %v217
  %219 = vmatmul.f32.gmra.mxu0 %v108
  %v220 = vpop.f32.mrf.mxu0
  %v221 = vadd.f32 %v56, %v220
  %222 = vmatmul.f32.gmra.mxu0 %v111
  %v223 = vpop.f32.mrf.mxu0
  %v224 = vadd.f32 %v56, %v223
  %225 = vmatmul.f32.gmra.mxu0 %v114
  %v226 = vpop.f32.mrf.mxu0
  %v227 = vadd.f32 %v56, %v226
  %228 = vmatmul.f32.gmra.mxu0 %v117
  %v229 = vpop.f32.mrf.mxu0
  %v230 = vadd.f32 %v56, %v229
  %231 = vmatmul.f32.gmra.mxu0 %v120
  %v232 = vpop.f32.mrf.mxu0
  %v233 = vadd.f32 %v56, %v232
  %234 = vmatmul.f32.gmra.mxu0 %v123
  %v235 = vpop.f32.mrf.mxu0
  %v236 = vadd.f32 %v56, %v235
  %237 = vmatmul.f32.gmra.mxu0 %v126
  %v238 = vpop.f32.mrf.mxu0
  %v239 = vadd.f32 %v56, %v238
  %240 = vmatmul.f32.gmra.mxu0 %v129
  %v241 = vpop.f32.mrf.mxu0
  %v242 = vadd.f32 %v56, %v241
  %243 = vmatmul.f32.gmra.mxu0 %v132
  %v244 = vpop.f32.mrf.mxu0
  %v245 = vadd.f32 %v56, %v244
  %246 = vmatmul.f32.gmra.mxu0 %v135
  %v247 = vpop.f32.mrf.mxu0
  %v248 = vadd.f32 %v56, %v247
  %249 = vmatmul.f32.gmra.mxu0 %v138
  %v250 = vpop.f32.mrf.mxu0
  %v251 = vadd.f32 %v56, %v250
  %252 = vmatmul.f32.gmra.mxu0 %v141
  %v253 = vpop.f32.mrf.mxu0
  %v254 = vadd.f32 %v56, %v253
  %255 = vmatmul.f32.gmra.mxu0 %v144
  %v256 = vpop.f32.mrf.mxu0
  %v257 = vadd.f32 %v56, %v256
  %258 = vmatmul.f32.gmra.mxu0 %v147
  %v259 = vpop.f32.mrf.mxu0
  %v260 = vadd.f32 %v56, %v259
  %261 = vmatmul.f32.gmra.mxu0 %v150
  %v262 = vpop.f32.mrf.mxu0
  %v263 = vadd.f32 %v56, %v262
  %264 = vmatmul.f32.gmra.mxu0 %v153
  %v265 = vpop.f32.mrf.mxu0
  %v266 = vadd.f32 %v56, %v265
  %267 = vdwg.mxu0
  %v268 = vmax.f32 %v173, 0.0
  %v269 = vmax.f32 %v176, 0.0
  %v270 = vmax.f32 %v179, 0.0
  %v271 = vmax.f32 %v182, 0.0
  %v272 = vmax.f32 %v185, 0.0
  %v273 = vmax.f32 %v188, 0.0
  %v274 = vmax.f32 %v191, 0.0
  %v275 = vmax.f32 %v194, 0.0
  %v276 = vmax.f32 %v197, 0.0
  %v277 = vmax.f32 %v200, 0.0
  %v278 = vmax.f32 %v203, 0.0
  %v279 = vmax.f32 %v206, 0.0
  %v280 = vmax.f32 %v209, 0.0
  %v281 = vmax.f32 %v212, 0.0
  %v282 = vmax.f32 %v215, 0.0
  %v283 = vmax.f32 %v218, 0.0
  %v284 = vmax.f32 %v221, 0.0
  %v285 = vmax.f32 %v224, 0.0
  %v286 = vmax.f32 %v227, 0.0
  %v287 = vmax.f32 %v230, 0.0
  %v288 = vmax.f32 %v233, 0.0
  %v289 = vmax.f32 %v236, 0.0
  %v290 = vmax.f32 %v239, 0.0
  %v291 = vmax.f32 %v242, 0.0
  %v292 = vmax.f32 %v245, 0.0
  %v293 = vmax.f32 %v248, 0.0
  %v294 = vmax.f32 %v251, 0.0
  %v295 = vmax.f32 %v254, 0.0
  %v296 = vmax.f32 %v257, 0.0
  %v297 = vmax.f32 %v260, 0.0
  %v298 = vmax.f32 %v263, 0.0
  %v299 = vmax.f32 %v266, 0.0
  %vm300 = vcmask 31744
  %301 = vst.msk [vmem:[%s3] sm:$0xff] %vm300, %v268
  %302 = vst.msk [vmem:[%s3 + $0x8] sm:$0xff] %vm300, %v269
  %303 = vst.msk [vmem:[%s3 + $0x10] sm:$0xff] %vm300, %v270
  %304 = vst.msk [vmem:[%s3 + $0x18] sm:$0xff] %vm300, %v271
  %305 = vst.msk [vmem:[%s3 + $0x20] sm:$0xff] %vm300, %v272
  %306 = vst.msk [vmem:[%s3 + $0x28] sm:$0xff] %vm300, %v273
  %307 = vst.msk [vmem:[%s3 + $0x30] sm:$0xff] %vm300, %v274
  %308 = vst.msk [vmem:[%s3 + $0x38] sm:$0xff] %vm300, %v275
  %309 = vst.msk [vmem:[%s3 + $0x40] sm:$0xff] %vm300, %v276
  %310 = vst.msk [vmem:[%s3 + $0x48] sm:$0xff] %vm300, %v277
  %311 = vst.msk [vmem:[%s3 + $0x50] sm:$0xff] %vm300, %v278
  %312 = vst.msk [vmem:[%s3 + $0x58] sm:$0xff] %vm300, %v279
  %313 = vst.msk [vmem:[%s3 + $0x60] sm:$0xff] %vm300, %v280
  %314 = vst.msk [vmem:[%s3 + $0x68] sm:$0xff] %vm300, %v281
  %315 = vst.msk [vmem:[%s3 + $0x70] sm:$0xff] %vm300, %v282
  %316 = vst.msk [vmem:[%s3 + $0x78] sm:$0xff] %vm300, %v283
  %317 = vst.msk [vmem:[%s3 + $0x80] sm:$0xff] %vm300, %v284
  %318 = vst.msk [vmem:[%s3 + $0x88] sm:$0xff] %vm300, %v285
  %319 = vst.msk [vmem:[%s3 + $0x90] sm:$0xff] %vm300, %v286
  %320 = vst.msk [vmem:[%s3 + $0x98] sm:$0xff] %vm300, %v287
  %321 = vst.msk [vmem:[%s3 + $0xa0] sm:$0xff] %vm300, %v288
  %322 = vst.msk [vmem:[%s3 + $0xa8] sm:$0xff] %vm300, %v289
  %323 = vst.msk [vmem:[%s3 + $0xb0] sm:$0xff] %vm300, %v290
  %324 = vst.msk [vmem:[%s3 + $0xb8] sm:$0xff] %vm300, %v291
  %325 = vst.msk [vmem:[%s3 + $0xc0] sm:$0xff] %vm300, %v292
  %326 = vst.msk [vmem:[%s3 + $0xc8] sm:$0xff] %vm300, %v293
  %327 = vst.msk [vmem:[%s3 + $0xd0] sm:$0xff] %vm300, %v294
  %328 = vst.msk [vmem:[%s3 + $0xd8] sm:$0xff] %vm300, %v295
  %329 = vst.msk [vmem:[%s3 + $0xe0] sm:$0xff] %vm300, %v296
  %330 = vst.msk [vmem:[%s3 + $0xe8] sm:$0xff] %vm300, %v297
  %331 = vst.msk [vmem:[%s3 + $0xf0] sm:$0xff] %vm300, %v298
  %332 = vst.msk [vmem:[%s3 + $0xf8] sm:$0xff] %vm300, %v299
  // Predicated region
  $region14: #{encoder_forward.7} parent=0 // pred_check
    _
  $region15: #{encoder_forward.7} parent=0 // pred_check_branch
    %334 = sbr.rel (0) target = $region17
  $region16: #{encoder_forward.7} parent=0 // pred_region
    _
  $region17: #{encoder_forward.7} parent=0 // pred_fallthru
    _
  // Predicated region
  $region18: #{encoder_forward.7} parent=0 // pred_check
    _
  $region19: #{encoder_forward.7} parent=0 // pred_check_branch
    %336 = sbr.rel (0) target = $region21
  $region20: #{encoder_forward.7} parent=0 // pred_region
    _
  $region21: #{encoder_forward.7} parent=0 // pred_fallthru
    _

// kernel: encoder_forward.9
$region0: #{encoder_forward.9}
  #allocation0 [shape = 'u32[]', space=smem, size = 0x4, offset = 0x4, fixed_abs, tag = 'smem constant byte address 0x4 - core index']
  #allocation1 [shape = 'u32[72,128]{1,0:T(1,128)}', space=vmem, size = 0x9000, scoped, tag = 'internal scratch']
  %s0 = inlined_call_operand.vmem [shape: f32[2,4,16,8], index: 0, kind: input, shape index: {}]
  %s1 = inlined_call_operand.vmem [shape: f32[2,4,16,8], index: 1, kind: input, shape index: {}]
  %s2 = inlined_call_operand.vmem [shape: f32[2,4,16,8], index: 2, kind: input, shape index: {}]
  %s3 = inlined_call_operand.vmem [shape: f32[4,16,16], index: 3, kind: input, shape index: {}]
  %s4 = inlined_call_operand.vmem [shape: f32[2,16,32], index: 4, kind: input, shape index: {}]
  %s5 = inlined_call_operand.vmem [shape: f32[4,8,32], index: 5, kind: input, shape index: {}]
  %s6 = inlined_call_operand.vmem [shape: f32[1,32], index: 6, kind: input, shape index: {}]
  %s7 = inlined_call_operand.vmem [shape: f32[1,32], index: 7, kind: input, shape index: {}]
  %s8 = inlined_call_operand.vmem [shape: f32[1,32], index: 8, kind: input, shape index: {}]
  %s9 = inlined_call_operand.vmem [shape: f32[1,32], index: 9, kind: input, shape index: {}]
  %s10 = inlined_call_operand.vmem [shape: f32[1,32], index: 10, kind: input, shape index: {}]
  %s11 = inlined_call_operand.vmem [shape: f32[2,16,32], index: 11, kind: output, shape index: {}]
  %s12 = sld [smem:[#allocation0]]
  $region77: #{encoder_forward.9} parent=0
    _
  %s14 = ssub.s32 1, %s12
  %s15 = scalar_select 0, %s14, %s12
  loop: start=0, step=1, limit=4
  $region2: #{encoder_forward.9} parent=0 // loop_pre_header
    _
  $region3: #{encoder_forward.9} parent=0 // loop_header
    %s17 = sphi 0, %s21
    %p18 = scmp.ge.s32.totalorder %s17, 4
    %s24 = sphi 0, %s36
    %s25 = sphi 0, %s32
    %s26 = sphi 0, %s24
    %s27 = sphi 0, %s25
    %s28 = sphi 0, %s26
    %s29 = sphi 0, %s27
    %s41 = sphi 0, %s43
    %s44 = sphi 0, %s41
    %s45 = sphi 0, %s44
    %s61 = sphi 0, %s45
    %s67 = sphi 0, %s69
    %s70 = sphi 0, %s67
    %s71 = sphi 0, %s70
    %s87 = sphi 0, %s71
    %s93 = sphi 0, %s95
    %s96 = sphi 0, %s93
    %s97 = sphi 0, %s96
    %s113 = sphi 0, %s97
    %s119 = sphi 0, %s121
    %s122 = sphi 0, %s119
    %s123 = sphi 0, %s122
    %s139 = sphi 0, %s123
    %s147 = sphi 0, %s149
    %s150 = sphi 0, %s147
    %s151 = sphi 0, %s150
    %s167 = sphi 0, %s151
    %s171 = sphi 0, %s171
    %s173 = sphi 0, %s171
    %s174 = sphi 0, %s173
    %s188 = sphi 0, %s174
    %s192 = sphi 0, %s192
    %s194 = sphi 0, %s192
    %s195 = sphi 0, %s194
    %s209 = sphi 0, %s195
    %s213 = sphi 0, %s213
    %s215 = sphi 0, %s213
    %s216 = sphi 0, %s215
    %s230 = sphi 0, %s216
    %s234 = sphi 0, %s234
    %s236 = sphi 0, %s234
    %s237 = sphi 0, %s236
    %s251 = sphi 0, %s237
    %s255 = sphi 0, %s255
    %s257 = sphi 0, %s255
    %s258 = sphi 0, %s257
    %s272 = sphi 0, %s258
    %s276 = sphi 0, %s276
    %s278 = sphi 0, %s276
    %s279 = sphi 0, %s278
    %s293 = sphi 0, %s279
    %s301 = sphi 0, %s303
    %s304 = sphi 0, %s301
    %s305 = sphi 0, %s304
    %s321 = sphi 0, %s305
  $region4: #{encoder_forward.9} parent=0 // loop_header_branch
    %20 = sbr.rel (%p18) target = $region8
  $region5: #{encoder_forward.9} parent=0 // loop_body
    %s22 = ssub.s32 %s17, 1
    %s23 = ssub.s32 %s17, 2
    %s30 = sadd.s32 1, %s25
    %p31 = scmp.ge.s32.totalorder %s30, 1
    %s32 = scalar_select %p31, 0, %s30
    %s33 = sadd.s32 1, %s24
    %s34 = scalar_select %p31, %s33, %s24
    %p35 = scmp.ge.s32.totalorder %s34, 2
    %s36 = scalar_select %p35, 0, %s34
    %s37 = ssub.s32 %s24, %s36
    %s38 = ssub.s32 %s25, %s32
    %s39 = sor.u32 %s37, %s38
    %p40 = scmp.eq.s32.totalorder %s39, 0
    %s42 = sadd.s32 %s41, 1
    %s43 = scalar_select %p40, %s41, %s42
    %p46 = pneg %p40
    %p47 = scmp.eq.s32.totalorder %s17, 1
    %p48 = por %p46, %p47
    %p49 = scmp.ne.s32.totalorder %s41, %s44
    %p50 = scmp.eq.s32.totalorder %s17, 0
    %p51 = por %p49, %p50
    %p52 = scmp.ne.s32.totalorder %s41, %s44
    %p53 = scmp.eq.s32.totalorder %s22, 1
    %p54 = por %p52, %p53
    %p55 = scmp.ne.s32.totalorder %s44, %s45
    %p56 = scmp.eq.s32.totalorder %s22, 0
    %p57 = por %p55, %p56
    %p58 = scmp.ne.s32.totalorder %s44, %s45
    %p59 = scmp.eq.s32.totalorder %s23, 1
    %p60 = por %p58, %p59
    %p62 = scmp.ne.s32.totalorder %s45, %s61
    %p63 = scmp.eq.s32.totalorder %s23, 0
    %p64 = por %p62, %p63
    %s65 = ssub.s32 %s24, %s36
    %p66 = scmp.eq.s32.totalorder %s65, 0
    %s68 = sadd.s32 %s67, 1
    %s69 = scalar_select %p66, %s67, %s68
    %p72 = pneg %p66
    %p73 = scmp.eq.s32.totalorder %s17, 1
    %p74 = por %p72, %p73
    %p75 = scmp.ne.s32.totalorder %s67, %s70
    %p76 = scmp.eq.s32.totalorder %s17, 0
    %p77 = por %p75, %p76
    %p78 = scmp.ne.s32.totalorder %s67, %s70
    %p79 = scmp.eq.s32.totalorder %s22, 1
    %p80 = por %p78, %p79
    %p81 = scmp.ne.s32.totalorder %s70, %s71
    %p82 = scmp.eq.s32.totalorder %s22, 0
    %p83 = por %p81, %p82
    %p84 = scmp.ne.s32.totalorder %s70, %s71
    %p85 = scmp.eq.s32.totalorder %s23, 1
    %p86 = por %p84, %p85
    %p88 = scmp.ne.s32.totalorder %s71, %s87
    %p89 = scmp.eq.s32.totalorder %s23, 0
    %p90 = por %p88, %p89
    %s91 = ssub.s32 %s24, %s36
    %p92 = scmp.eq.s32.totalorder %s91, 0
    %s94 = sadd.s32 %s93, 1
    %s95 = scalar_select %p92, %s93, %s94
    %p98 = pneg %p92
    %p99 = scmp.eq.s32.totalorder %s17, 1
    %p100 = por %p98, %p99
    %p101 = scmp.ne.s32.totalorder %s93, %s96
    %p102 = scmp.eq.s32.totalorder %s17, 0
    %p103 = por %p101, %p102
    %p104 = scmp.ne.s32.totalorder %s93, %s96
    %p105 = scmp.eq.s32.totalorder %s22, 1
    %p106 = por %p104, %p105
    %p107 = scmp.ne.s32.totalorder %s96, %s97
    %p108 = scmp.eq.s32.totalorder %s22, 0
    %p109 = por %p107, %p108
    %p110 = scmp.ne.s32.totalorder %s96, %s97
    %p111 = scmp.eq.s32.totalorder %s23, 1
    %p112 = por %p110, %p111
    %p114 = scmp.ne.s32.totalorder %s97, %s113
    %p115 = scmp.eq.s32.totalorder %s23, 0
    %p116 = por %p114, %p115
    %s117 = ssub.s32 %s25, %s32
    %p118 = scmp.eq.s32.totalorder %s117, 0
    %s120 = sadd.s32 %s119, 1
    %s121 = scalar_select %p118, %s119, %s120
    %p124 = pneg %p118
    %p125 = scmp.eq.s32.totalorder %s17, 1
    %p126 = por %p124, %p125
    %p127 = scmp.ne.s32.totalorder %s119, %s122
    %p128 = scmp.eq.s32.totalorder %s17, 0
    %p129 = por %p127, %p128
    %p130 = scmp.ne.s32.totalorder %s119, %s122
    %p131 = scmp.eq.s32.totalorder %s22, 1
    %p132 = por %p130, %p131
    %p133 = scmp.ne.s32.totalorder %s122, %s123
    %p134 = scmp.eq.s32.totalorder %s22, 0
    %p135 = por %p133, %p134
    %p136 = scmp.ne.s32.totalorder %s122, %s123
    %p137 = scmp.eq.s32.totalorder %s23, 1
    %p138 = por %p136, %p137
    %p140 = scmp.ne.s32.totalorder %s123, %s139
    %p141 = scmp.eq.s32.totalorder %s23, 0
    %p142 = por %p140, %p141
    %s143 = ssub.s32 %s24, %s36
    %s144 = ssub.s32 %s25, %s32
    %s145 = sor.u32 %s143, %s144
    %p146 = scmp.eq.s32.totalorder %s145, 0
    %s148 = sadd.s32 %s147, 1
    %s149 = scalar_select %p146, %s147, %s148
    %p152 = pneg %p146
    %p153 = scmp.eq.s32.totalorder %s17, 1
    %p154 = por %p152, %p153
    %p155 = scmp.ne.s32.totalorder %s147, %s150
    %p156 = scmp.eq.s32.totalorder %s17, 0
    %p157 = por %p155, %p156
    %p158 = scmp.ne.s32.totalorder %s147, %s150
    %p159 = scmp.eq.s32.totalorder %s22, 1
    %p160 = por %p158, %p159
    %p161 = scmp.ne.s32.totalorder %s150, %s151
    %p162 = scmp.eq.s32.totalorder %s22, 0
    %p163 = por %p161, %p162
    %p164 = scmp.ne.s32.totalorder %s150, %s151
    %p165 = scmp.eq.s32.totalorder %s23, 1
    %p166 = por %p164, %p165
    %p168 = scmp.ne.s32.totalorder %s151, %s167
    %p169 = scmp.eq.s32.totalorder %s23, 0
    %p170 = por %p168, %p169
    %s172 = sadd.s32 %s171, 1
    %p175 = scmp.eq.s32.totalorder %s17, 1
    %p176 = scmp.ne.s32.totalorder %s171, %s173
    %p177 = scmp.eq.s32.totalorder %s17, 0
    %p178 = por %p176, %p177
    %p179 = scmp.ne.s32.totalorder %s171, %s173
    %p180 = scmp.eq.s32.totalorder %s22, 1
    %p181 = por %p179, %p180
    %p182 = scmp.ne.s32.totalorder %s173, %s174
    %p183 = scmp.eq.s32.totalorder %s22, 0
    %p184 = por %p182, %p183
    %p185 = scmp.ne.s32.totalorder %s173, %s174
    %p186 = scmp.eq.s32.totalorder %s23, 1
    %p187 = por %p185, %p186
    %p189 = scmp.ne.s32.totalorder %s174, %s188
    %p190 = scmp.eq.s32.totalorder %s23, 0
    %p191 = por %p189, %p190
    %s193 = sadd.s32 %s192, 1
    %p196 = scmp.eq.s32.totalorder %s17, 1
    %p197 = scmp.ne.s32.totalorder %s192, %s194
    %p198 = scmp.eq.s32.totalorder %s17, 0
    %p199 = por %p197, %p198
    %p200 = scmp.ne.s32.totalorder %s192, %s194
    %p201 = scmp.eq.s32.totalorder %s22, 1
    %p202 = por %p200, %p201
    %p203 = scmp.ne.s32.totalorder %s194, %s195
    %p204 = scmp.eq.s32.totalorder %s22, 0
    %p205 = por %p203, %p204
    %p206 = scmp.ne.s32.totalorder %s194, %s195
    %p207 = scmp.eq.s32.totalorder %s23, 1
    %p208 = por %p206, %p207
    %p210 = scmp.ne.s32.totalorder %s195, %s209
    %p211 = scmp.eq.s32.totalorder %s23, 0
    %p212 = por %p210, %p211
    %s214 = sadd.s32 %s213, 1
    %p217 = scmp.eq.s32.totalorder %s17, 1
    %p218 = scmp.ne.s32.totalorder %s213, %s215
    %p219 = scmp.eq.s32.totalorder %s17, 0
    %p220 = por %p218, %p219
    %p221 = scmp.ne.s32.totalorder %s213, %s215
    %p222 = scmp.eq.s32.totalorder %s22, 1
    %p223 = por %p221, %p222
    %p224 = scmp.ne.s32.totalorder %s215, %s216
    %p225 = scmp.eq.s32.totalorder %s22, 0
    %p226 = por %p224, %p225
    %p227 = scmp.ne.s32.totalorder %s215, %s216
    %p228 = scmp.eq.s32.totalorder %s23, 1
    %p229 = por %p227, %p228
    %p231 = scmp.ne.s32.totalorder %s216, %s230
    %p232 = scmp.eq.s32.totalorder %s23, 0
    %p233 = por %p231, %p232
    %s235 = sadd.s32 %s234, 1
    %p238 = scmp.eq.s32.totalorder %s17, 1
    %p239 = scmp.ne.s32.totalorder %s234, %s236
    %p240 = scmp.eq.s32.totalorder %s17, 0
    %p241 = por %p239, %p240
    %p242 = scmp.ne.s32.totalorder %s234, %s236
    %p243 = scmp.eq.s32.totalorder %s22, 1
    %p244 = por %p242, %p243
    %p245 = scmp.ne.s32.totalorder %s236, %s237
    %p246 = scmp.eq.s32.totalorder %s22, 0
    %p247 = por %p245, %p246
    %p248 = scmp.ne.s32.totalorder %s236, %s237
    %p249 = scmp.eq.s32.totalorder %s23, 1
    %p250 = por %p248, %p249
    %p252 = scmp.ne.s32.totalorder %s237, %s251
    %p253 = scmp.eq.s32.totalorder %s23, 0
    %p254 = por %p252, %p253
    %s256 = sadd.s32 %s255, 1
    %p259 = scmp.eq.s32.totalorder %s17, 1
    %p260 = scmp.ne.s32.totalorder %s255, %s257
    %p261 = scmp.eq.s32.totalorder %s17, 0
    %p262 = por %p260, %p261
    %p263 = scmp.ne.s32.totalorder %s255, %s257
    %p264 = scmp.eq.s32.totalorder %s22, 1
    %p265 = por %p263, %p264
    %p266 = scmp.ne.s32.totalorder %s257, %s258
    %p267 = scmp.eq.s32.totalorder %s22, 0
    %p268 = por %p266, %p267
    %p269 = scmp.ne.s32.totalorder %s257, %s258
    %p270 = scmp.eq.s32.totalorder %s23, 1
    %p271 = por %p269, %p270
    %p273 = scmp.ne.s32.totalorder %s258, %s272
    %p274 = scmp.eq.s32.totalorder %s23, 0
    %p275 = por %p273, %p274
    %s277 = sadd.s32 %s276, 1
    %p280 = scmp.eq.s32.totalorder %s17, 1
    %p281 = scmp.ne.s32.totalorder %s276, %s278
    %p282 = scmp.eq.s32.totalorder %s17, 0
    %p283 = por %p281, %p282
    %p284 = scmp.ne.s32.totalorder %s276, %s278
    %p285 = scmp.eq.s32.totalorder %s22, 1
    %p286 = por %p284, %p285
    %p287 = scmp.ne.s32.totalorder %s278, %s279
    %p288 = scmp.eq.s32.totalorder %s22, 0
    %p289 = por %p287, %p288
    %p290 = scmp.ne.s32.totalorder %s278, %s279
    %p291 = scmp.eq.s32.totalorder %s23, 1
    %p292 = por %p290, %p291
    %p294 = scmp.ne.s32.totalorder %s279, %s293
    %p295 = scmp.eq.s32.totalorder %s23, 0
    %p296 = por %p294, %p295
    %s297 = ssub.s32 %s24, %s36
    %s298 = ssub.s32 %s25, %s32
    %s299 = sor.u32 %s297, %s298
    %p300 = scmp.eq.s32.totalorder %s299, 0
    %s302 = sadd.s32 %s301, 1
    %s303 = scalar_select %p300, %s301, %s302
    %p306 = pneg %p300
    %p307 = scmp.eq.s32.totalorder %s17, 1
    %p308 = por %p306, %p307
    %p309 = scmp.ne.s32.totalorder %s301, %s304
    %p310 = scmp.eq.s32.totalorder %s17, 0
    %p311 = por %p309, %p310
    %p312 = scmp.ne.s32.totalorder %s301, %s304
    %p313 = scmp.eq.s32.totalorder %s22, 1
    %p314 = por %p312, %p313
    %p315 = scmp.ne.s32.totalorder %s304, %s305
    %p316 = scmp.eq.s32.totalorder %s22, 0
    %p317 = por %p315, %p316
    %p318 = scmp.ne.s32.totalorder %s304, %s305
    %p319 = scmp.eq.s32.totalorder %s23, 1
    %p320 = por %p318, %p319
    %p322 = scmp.ne.s32.totalorder %s305, %s321
    %p323 = scmp.eq.s32.totalorder %s23, 0
    %p324 = por %p322, %p323
    %p325 = scmp.le.s32.totalorder 1, %s17
    %p326 = scmp.lt.s32.totalorder %s17, 3
    %p327 = pnand %p325, %p326
    %p328 = pneg %p327
    // Predicated region
    $region9: #{encoder_forward.9} parent=5 // pred_check
      _
    $region10: #{encoder_forward.9} parent=5 // pred_check_branch
      %330 = sbr.rel (%p327) target = $region12
    $region11: #{encoder_forward.9} parent=5 // pred_region
      %s331 = ssub.s32 %s17, 1
      // Predicated region
      $region13: #{encoder_forward.9} parent=11 // pred_check
        %p332 = pneg %p135
      $region14: #{encoder_forward.9} parent=11 // pred_check_branch
        %334 = sbr.rel (%p332) target = $region16
      $region15: #{encoder_forward.9} parent=11 // pred_region
        %s335 = smul.u32 2, %s27
        %p336 = scmp.lt.s32.totalorder %s335, 1
        %s337 = scalar_select %p336, %s335, 1
        %s338 = smul.addr %s337, 8
        %s339 = scalar_lea.vmem %s3, %s338
        %s340 = smul.u32 2, %s27
      $region16: #{encoder_forward.9} parent=11 // pred_fallthru
        _
      // Predicated region
      $region17: #{encoder_forward.9} parent=11 // pred_check
        %p341 = pneg %p184
      $region18: #{encoder_forward.9} parent=11 // pred_check_branch
        %343 = sbr.rel (%p341) target = $region20
      $region19: #{encoder_forward.9} parent=11 // pred_region
        _
      $region20: #{encoder_forward.9} parent=11 // pred_fallthru
        _
      // Predicated region
      $region21: #{encoder_forward.9} parent=11 // pred_check
        %p344 = pneg %p205
      $region22: #{encoder_forward.9} parent=11 // pred_check_branch
        %346 = sbr.rel (%p344) target = $region24
      $region23: #{encoder_forward.9} parent=11 // pred_region
        _
      $region24: #{encoder_forward.9} parent=11 // pred_fallthru
        _
      // Predicated region
      $region25: #{encoder_forward.9} parent=11 // pred_check
        %p347 = pneg %p226
      $region26: #{encoder_forward.9} parent=11 // pred_check_branch
        %349 = sbr.rel (%p347) target = $region28
      $region27: #{encoder_forward.9} parent=11 // pred_region
        _
      $region28: #{encoder_forward.9} parent=11 // pred_fallthru
        _
      // Predicated region
      $region29: #{encoder_forward.9} parent=11 // pred_check
        %p350 = pneg %p247
      $region30: #{encoder_forward.9} parent=11 // pred_check_branch
        %352 = sbr.rel (%p350) target = $region32
      $region31: #{encoder_forward.9} parent=11 // pred_region
        _
      $region32: #{encoder_forward.9} parent=11 // pred_fallthru
        _
      // Predicated region
      $region33: #{encoder_forward.9} parent=11 // pred_check
        %p353 = pneg %p268
      $region34: #{encoder_forward.9} parent=11 // pred_check_branch
        %355 = sbr.rel (%p353) target = $region36
      $region35: #{encoder_forward.9} parent=11 // pred_region
        _
      $region36: #{encoder_forward.9} parent=11 // pred_fallthru
        _
      // Predicated region
      $region37: #{encoder_forward.9} parent=11 // pred_check
        %p356 = pneg %p289
      $region38: #{encoder_forward.9} parent=11 // pred_check_branch
        %358 = sbr.rel (%p356) target = $region40
      $region39: #{encoder_forward.9} parent=11 // pred_region
        _
      $region40: #{encoder_forward.9} parent=11 // pred_fallthru
        _
    $region12: #{encoder_forward.9} parent=5 // pred_fallthru
      _
    %p359 = scmp.lt.s32.totalorder %s17, 2
    // Predicated region
    $region41: #{encoder_forward.9} parent=5 // pred_check
      %p360 = pneg %p359
    $region42: #{encoder_forward.9} parent=5 // pred_check_branch
      %362 = sbr.rel (%p360) target = $region44
    $region43: #{encoder_forward.9} parent=5 // pred_region
      // Predicated region
      $region45: #{encoder_forward.9} parent=43 // pred_check
        %p363 = pneg %p51
      $region46: #{encoder_forward.9} parent=43 // pred_check_branch
        %365 = sbr.rel (%p363) target = $region48
      $region47: #{encoder_forward.9} parent=43 // pred_region
        %s366 = smul.u32 2, %s25
        %p367 = scmp.lt.s32.totalorder %s24, 1
        %s368 = scalar_select %p367, %s24, 1
        %p369 = scmp.lt.s32.totalorder %s366, 1
        %s370 = scalar_select %p369, %s366, 1
        %s371 = smul.addr %s368, 8
        %s372 = sadd.s32 %s370, %s371
        %s373 = smul.addr %s372, 8
        %s374 = scalar_lea.vmem %s0, %s373
        %s375 = smul.u32 2, %s25
      $region48: #{encoder_forward.9} parent=43 // pred_fallthru
        _
      // Predicated region
      $region49: #{encoder_forward.9} parent=43 // pred_check
        %p376 = pneg %p77
      $region50: #{encoder_forward.9} parent=43 // pred_check_branch
        %378 = sbr.rel (%p376) target = $region52
      $region51: #{encoder_forward.9} parent=43 // pred_region
        %p379 = scmp.lt.s32.totalorder %s24, 1
        %s380 = scalar_select %p379, %s24, 1
        %s381 = smul.addr %s380, 8
        %s382 = smul.addr %s381, 8
        %s383 = scalar_lea.vmem %s1, %s382
      $region52: #{encoder_forward.9} parent=43 // pred_fallthru
        _
      // Predicated region
      $region53: #{encoder_forward.9} parent=43 // pred_check
        %p384 = pneg %p103
      $region54: #{encoder_forward.9} parent=43 // pred_check_branch
        %386 = sbr.rel (%p384) target = $region56
      $region55: #{encoder_forward.9} parent=43 // pred_region
        %p387 = scmp.lt.s32.totalorder %s24, 1
        %s388 = scalar_select %p387, %s24, 1
        %s389 = smul.addr %s388, 8
        %s390 = smul.addr %s389, 8
        %s391 = scalar_lea.vmem %s2, %s390
      $region56: #{encoder_forward.9} parent=43 // pred_fallthru
        _
      // Predicated region
      $region57: #{encoder_forward.9} parent=43 // pred_check
        %p392 = pneg %p157
      $region58: #{encoder_forward.9} parent=43 // pred_check_branch
        %394 = sbr.rel (%p392) target = $region60
      $region59: #{encoder_forward.9} parent=43 // pred_region
        %s395 = smul.u32 2, %s25
        %p396 = scmp.lt.s32.totalorder %s24, 1
        %s397 = scalar_select %p396, %s24, 1
        %p398 = scmp.lt.s32.totalorder %s395, 1
        %s399 = scalar_select %p398, %s395, 1
        %s400 = smul.addr %s397, 2
        %s401 = sadd.s32 %s399, %s400
        %s402 = smul.addr %s401, 8
        %s403 = scalar_lea.vmem %s4, %s402
        %s404 = smul.u32 2, %s25
      $region60: #{encoder_forward.9} parent=43 // pred_fallthru
        _
    $region44: #{encoder_forward.9} parent=5 // pred_fallthru
      _
    %p405 = scmp.le.s32.totalorder 1, %s17
    %p406 = scmp.lt.s32.totalorder %s17, 3
    %p407 = pnand %p405, %p406
    %p408 = pneg %p407
    // Predicated region
    $region61: #{encoder_forward.9} parent=5 // pred_check
      _
    $region62: #{encoder_forward.9} parent=5 // pred_check_branch
      %410 = sbr.rel (%p407) target = $region64
    $region63: #{encoder_forward.9} parent=5 // pred_region
      %s411 = ssub.s32 %s17, 1
      %s412 = smul.u32 2, %s27
      %p413 = scmp.lt.s32.totalorder %s26, 1
      %s414 = scalar_select %p413, %s26, 1
      %p415 = scmp.lt.s32.totalorder %s412, 1
      %s416 = scalar_select %p415, %s412, 1
      %s417 = smul.addr %s414, 8
      %s418 = sadd.s32 %s416, %s417
      %s419 = smul.addr %s418, 8
      %s420 = scalar_lea.vmem %s0, %s419
      %p421 = pneg %p57
      %p422 = pneg %p54
      %p423 = scmp.lt.s32.totalorder %s26, 1
      %s424 = scalar_select %p423, %s26, 1
      %s425 = smul.addr %s424, 8
      %s426 = smul.addr %s425, 8
      %s427 = scalar_lea.vmem %s1, %s426
      %p428 = pneg %p83
      %p429 = pneg %p80
      %p430 = scmp.lt.s32.totalorder %s26, 1
      %s431 = scalar_select %p430, %s26, 1
      %s432 = smul.addr %s431, 8
      %s433 = smul.addr %s432, 8
      %s434 = scalar_lea.vmem %s2, %s433
      %p435 = pneg %p109
      %p436 = pneg %p106
      %s437 = smul.u32 2, %s27
      %p438 = scmp.lt.s32.totalorder %s437, 1
      %s439 = scalar_select %p438, %s437, 1
      %s440 = smul.addr %s439, 8
      %s441 = scalar_lea.vmem %s3, %s440
      %p442 = pneg %p135
      %p443 = pneg %p132
      %s444 = smul.u32 2, %s27
      %p445 = scmp.lt.s32.totalorder %s26, 1
      %s446 = scalar_select %p445, %s26, 1
      %p447 = scmp.lt.s32.totalorder %s444, 1
      %s448 = scalar_select %p447, %s444, 1
      %s449 = smul.addr %s446, 2
      %s450 = sadd.s32 %s448, %s449
      %s451 = smul.addr %s450, 8
      %s452 = scalar_lea.vmem %s4, %s451
      %p453 = pneg %p163
      %p454 = pneg %p160
      %p455 = pneg %p184
      %p456 = pneg %p181
      %p457 = pneg %p205
      %p458 = pneg %p202
      %p459 = pneg %p226
      %p460 = pneg %p223
      %p461 = pneg %p247
      %p462 = pneg %p244
      %p463 = pneg %p268
      %p464 = pneg %p265
      %p465 = pneg %p289
      %p466 = pneg %p286
      %p467 = pneg %p317
      %p468 = pneg %p314
      %s469 = smul.u32 2, %s27
      %p470 = scmp.lt.s32.totalorder %s26, 1
      %s471 = scalar_select %p470, %s26, 1
      %p472 = scmp.lt.s32.totalorder %s469, 1
      %s473 = scalar_select %p472, %s469, 1
      %s474 = smul.addr %s471, 2
      %s475 = sadd.s32 %s473, %s474
      %s476 = smul.addr %s475, 8
      %s477 = scalar_lea.vmem %s11, %s476
      %s478 = smul.u32 2, %s27
      %p479 = scmp.lt.s32.totalorder %s26, 1
      %s480 = scalar_select %p479, %s26, 1
      %p481 = scmp.lt.s32.totalorder %s478, 1
      %s482 = scalar_select %p481, %s478, 1
      %s483 = smul.addr %s480, 8
      %s484 = sadd.s32 %s482, %s483
      %s485 = smul.addr %s484, 8
      %s486 = scalar_lea.vmem %s0, %s485
      %s487 = smul.u32 2, %s27
      %p488 = scmp.lt.s32.totalorder %s26, 1
      %s489 = scalar_select %p488, %s26, 1
      %s490 = smul.addr %s489, 8
      %s491 = smul.addr %s490, 8
      %s492 = scalar_lea.vmem %s1, %s491
      %p493 = scmp.lt.s32.totalorder %s26, 1
      %s494 = scalar_select %p493, %s26, 1
      %s495 = smul.addr %s494, 8
      %s496 = smul.addr %s495, 8
      %s497 = scalar_lea.vmem %s2, %s496
      %s498 = smul.u32 2, %s27
      %p499 = scmp.lt.s32.totalorder %s498, 1
      %s500 = scalar_select %p499, %s498, 1
      %s501 = smul.addr %s500, 8
      %s502 = scalar_lea.vmem %s3, %s501
      %s503 = smul.u32 2, %s27
      %s504 = smul.u32 2, %s27
      %p505 = scmp.lt.s32.totalorder %s26, 1
      %s506 = scalar_select %p505, %s26, 1
      %p507 = scmp.lt.s32.totalorder %s504, 1
      %s508 = scalar_select %p507, %s504, 1
      %s509 = smul.addr %s506, 2
      %s510 = sadd.s32 %s508, %s509
      %s511 = smul.addr %s510, 8
      %s512 = scalar_lea.vmem %s4, %s511
      %s513 = smul.u32 2, %s27
      %s514 = smul.u32 2, %s27
      %p515 = scmp.lt.s32.totalorder %s26, 1
      %s516 = scalar_select %p515, %s26, 1
      %p517 = scmp.lt.s32.totalorder %s514, 1
      %s518 = scalar_select %p517, %s514, 1
      %s519 = smul.addr %s516, 2
      %s520 = sadd.s32 %s518, %s519
      %s521 = smul.addr %s520, 8
      %s522 = scalar_lea.vmem %s11, %s521
      %s523 = smul.u32 2, %s27
      %v524 = vld [vmem:[%s486] sm:$0xff]
      %v525 = vld [vmem:[%s486 + $0x8] sm:$0xff]
      %v526 = vld [vmem:[%s486 + $0x10] sm:$0xff]
      %v527 = vld [vmem:[%s486 + $0x18] sm:$0xff]
      %v528 = vld [vmem:[%s486 + $0x20] sm:$0xff]
      %v529 = vld [vmem:[%s486 + $0x28] sm:$0xff]
      %v530 = vld [vmem:[%s486 + $0x30] sm:$0xff]
      %v531 = vld [vmem:[%s486 + $0x38] sm:$0xff]
      %v532 = vld [vmem:[%s492] sm:$0xff]
      %v533 = vld [vmem:[%s492 + $0x8] sm:$0xff]
      %v534 = vld [vmem:[%s492 + $0x10] sm:$0xff]
      %v535 = vld [vmem:[%s492 + $0x18] sm:$0xff]
      %v536 = vld [vmem:[%s492 + $0x20] sm:$0xff]
      %v537 = vld [vmem:[%s492 + $0x28] sm:$0xff]
      %v538 = vld [vmem:[%s492 + $0x30] sm:$0xff]
      %v539 = vld [vmem:[%s492 + $0x38] sm:$0xff]
      %v540 = vld [vmem:[%s497] sm:$0xff]
      %v541 = vld [vmem:[%s497 + $0x8] sm:$0xff]
      %v542 = vld [vmem:[%s497 + $0x10] sm:$0xff]
      %v543 = vld [vmem:[%s497 + $0x18] sm:$0xff]
      %v544 = vld [vmem:[%s497 + $0x20] sm:$0xff]
      %v545 = vld [vmem:[%s497 + $0x28] sm:$0xff]
      %v546 = vld [vmem:[%s497 + $0x30] sm:$0xff]
      %v547 = vld [vmem:[%s497 + $0x38] sm:$0xff]
      %vm548 = vcmask 64512
      %v550 = vsel %vm548, %v524, 0
      %v553 = vsel %vm548, %v525, 0
      %v556 = vsel %vm548, %v532, 0
      %v559 = vsel %vm548, %v533, 0
      %561 = vmatpush.xpose.msra.mxu0 0.0
      %562 = vmatpush.xpose.msra.mxu0 0.0
      %563 = vmatpush.xpose.msra.mxu0 0.0
      %564 = vmatpush.xpose.msra.mxu0 0.0
      %565 = vmatpush.xpose.msra.mxu0 0.0
      %566 = vmatpush.xpose.msra.mxu0 0.0
      %567 = vmatpush.xpose.msra.mxu0 0.0
      %568 = vmatpush.xpose.msra.mxu0 0.0
      %569 = vmatpush.xpose.msra.mxu0 0.0
      %570 = vmatpush.xpose.msra.mxu0 0.0
      %571 = vmatpush.xpose.msra.mxu0 0.0
      %572 = vmatpush.xpose.msra.mxu0 0.0
      %573 = vmatpush.xpose.msra.mxu0 0.0
      %574 = vmatpush.xpose.msra.mxu0 0.0
      %575 = vmatpush.xpose.msra.mxu0 %v559
      %576 = vmatpush.xpose.msra.mxu0 %v556
      %577 = vmatmul.f32.gmra.mxu0 %v550
      %v578 = vpop.f32.mrf.mxu0
      %v579 = vadd.f32 0.0, %v578
      %580 = vmatmul.f32.gmra.mxu0 %v553
      %v581 = vpop.f32.mrf.mxu0
      %v582 = vadd.f32 0.0, %v581
      %583 = vdwg.mxu0
      %v585 = vsel %vm548, %v526, 0
      %v588 = vsel %vm548, %v527, 0
      %v591 = vsel %vm548, %v534, 0
      %v594 = vsel %vm548, %v535, 0
      %596 = vmatpush.xpose.msra.mxu0 0.0
      %597 = vmatpush.xpose.msra.mxu0 0.0
      %598 = vmatpush.xpose.msra.mxu0 0.0
      %599 = vmatpush.xpose.msra.mxu0 0.0
      %600 = vmatpush.xpose.msra.mxu0 0.0
      %601 = vmatpush.xpose.msra.mxu0 0.0
      %602 = vmatpush.xpose.msra.mxu0 0.0
      %603 = vmatpush.xpose.msra.mxu0 0.0
      %604 = vmatpush.xpose.msra.mxu0 0.0
      %605 = vmatpush.xpose.msra.mxu0 0.0
      %606 = vmatpush.xpose.msra.mxu0 0.0
      %607 = vmatpush.xpose.msra.mxu0 0.0
      %608 = vmatpush.xpose.msra.mxu0 0.0
      %609 = vmatpush.xpose.msra.mxu0 0.0
      %610 = vmatpush.xpose.msra.mxu0 %v594
      %611 = vmatpush.xpose.msra.mxu0 %v591
      %612 = vmatmul.f32.gmra.mxu0 %v585
      %v613 = vpop.f32.mrf.mxu0
      %v614 = vadd.f32 0.0, %v613
      %615 = vmatmul.f32.gmra.mxu0 %v588
      %v616 = vpop.f32.mrf.mxu0
      %v617 = vadd.f32 0.0, %v616
      %618 = vdwg.mxu0
      %v620 = vsel %vm548, %v528, 0
      %v623 = vsel %vm548, %v529, 0
      %v626 = vsel %vm548, %v536, 0
      %v629 = vsel %vm548, %v537, 0
      %631 = vmatpush.xpose.msra.mxu0 0.0
      %632 = vmatpush.xpose.msra.mxu0 0.0
      %633 = vmatpush.xpose.msra.mxu0 0.0
      %634 = vmatpush.xpose.msra.mxu0 0.0
      %635 = vmatpush.xpose.msra.mxu0 0.0
      %636 = vmatpush.xpose.msra.mxu0 0.0
      %637 = vmatpush.xpose.msra.mxu0 0.0
      %638 = vmatpush.xpose.msra.mxu0 0.0
      %639 = vmatpush.xpose.msra.mxu0 0.0
      %640 = vmatpush.xpose.msra.mxu0 0.0
      %641 = vmatpush.xpose.msra.mxu0 0.0
      %642 = vmatpush.xpose.msra.mxu0 0.0
      %643 = vmatpush.xpose.msra.mxu0 0.0
      %644 = vmatpush.xpose.msra.mxu0 0.0
      %645 = vmatpush.xpose.msra.mxu0 %v629
      %646 = vmatpush.xpose.msra.mxu0 %v626
      %647 = vmatmul.f32.gmra.mxu0 %v620
      %v648 = vpop.f32.mrf.mxu0
      %v649 = vadd.f32 0.0, %v648
      %650 = vmatmul.f32.gmra.mxu0 %v623
      %v651 = vpop.f32.mrf.mxu0
      %v652 = vadd.f32 0.0, %v651
      %653 = vdwg.mxu0
      %v655 = vsel %vm548, %v530, 0
      %v658 = vsel %vm548, %v531, 0
      %v661 = vsel %vm548, %v538, 0
      %v664 = vsel %vm548, %v539, 0
      %666 = vmatpush.xpose.msra.mxu0 0.0
      %667 = vmatpush.xpose.msra.mxu0 0.0
      %668 = vmatpush.xpose.msra.mxu0 0.0
      %669 = vmatpush.xpose.msra.mxu0 0.0
      %670 = vmatpush.xpose.msra.mxu0 0.0
      %671 = vmatpush.xpose.msra.mxu0 0.0
      %672 = vmatpush.xpose.msra.mxu0 0.0
      %673 = vmatpush.xpose.msra.mxu0 0.0
      %674 = vmatpush.xpose.msra.mxu0 0.0
      %675 = vmatpush.xpose.msra.mxu0 0.0
      %676 = vmatpush.xpose.msra.mxu0 0.0
      %677 = vmatpush.xpose.msra.mxu0 0.0
      %678 = vmatpush.xpose.msra.mxu0 0.0
      %679 = vmatpush.xpose.msra.mxu0 0.0
      %680 = vmatpush.xpose.msra.mxu0 %v664
      %681 = vmatpush.xpose.msra.mxu0 %v661
      %682 = vmatmul.f32.gmra.mxu0 %v655
      %v683 = vpop.f32.mrf.mxu0
      %v684 = vadd.f32 0.0, %v683
      %685 = vmatmul.f32.gmra.mxu0 %v658
      %v686 = vpop.f32.mrf.mxu0
      %v687 = vadd.f32 0.0, %v686
      %688 = vdwg.mxu0
      %v689 = vld [vmem:[%s502] sm:$0xff]
      %v690 = vld [vmem:[%s502 + $0x8] sm:$0xff]
      %v691 = vld [vmem:[%s502 + $0x10] sm:$0xff]
      %v692 = vld [vmem:[%s502 + $0x18] sm:$0xff]
      %v693 = vld [vmem:[%s502 + $0x20] sm:$0xff]
      %v694 = vld [vmem:[%s502 + $0x28] sm:$0xff]
      %v695 = vld [vmem:[%s502 + $0x30] sm:$0xff]
      %v696 = vld [vmem:[%s502 + $0x38] sm:$0xff]
      %v697 = vsub.f32 %v579, %v689
      %v698 = vsub.f32 %v582, %v690
      %v699 = vsub.f32 %v614, %v691
      %v700 = vsub.f32 %v617, %v692
      %v701 = vsub.f32 %v649, %v693
      %v702 = vsub.f32 %v652, %v694
      %v703 = vsub.f32 %v684, %v695
      %v704 = vsub.f32 %v687, %v696
      %vm705 = vcmask 130048
      %v706 = vsel %vm705, %v697, -inf
      %707 = vmax.xlane.f32.xlu0 %v706
      %v708 = vpop.xlane.xlu0 %707
      %v709 = vsel %vm705, %v698, -inf
      %710 = vmax.xlane.f32.xlu0 %v709
      %v711 = vpop.xlane.xlu0 %710
      %v712 = vsel %vm705, %v699, -inf
      %713 = vmax.xlane.f32.xlu0 %v712
      %v714 = vpop.xlane.xlu0 %713
      %v715 = vsel %vm705, %v700, -inf
      %716 = vmax.xlane.f32.xlu0 %v715
      %v717 = vpop.xlane.xlu0 %716
      %v718 = vsel %vm705, %v701, -inf
      %719 = vmax.xlane.f32.xlu0 %v718
      %v720 = vpop.xlane.xlu0 %719
      %v721 = vsel %vm705, %v702, -inf
      %722 = vmax.xlane.f32.xlu0 %v721
      %v723 = vpop.xlane.xlu0 %722
      %v724 = vsel %vm705, %v703, -inf
      %725 = vmax.xlane.f32.xlu0 %v724
      %v726 = vpop.xlane.xlu0 %725
      %v727 = vsel %vm705, %v704, -inf
      %728 = vmax.xlane.f32.xlu0 %v727
      %v729 = vpop.xlane.xlu0 %728
      %v730 = vsub.f32 %v697, %v708
      %v731 = vsub.f32 %v698, %v711
      %v732 = vsub.f32 %v699, %v714
      %v733 = vsub.f32 %v700, %v717
      %v734 = vsub.f32 %v701, %v720
      %v735 = vsub.f32 %v702, %v723
      %v736 = vsub.f32 %v703, %v726
      %v737 = vsub.f32 %v704, %v729
      %v738 = vmul.f32 %v730, 1.442695
      %v739 = vpow.pop %v738
      %v740 = vmul.f32 %v731, 1.442695
      %v741 = vpow.pop %v740
      %v742 = vmul.f32 %v732, 1.442695
      %v743 = vpow.pop %v742
      %v744 = vmul.f32 %v733, 1.442695
      %v745 = vpow.pop %v744
      %v746 = vmul.f32 %v734, 1.442695
      %v747 = vpow.pop %v746
      %v748 = vmul.f32 %v735, 1.442695
      %v749 = vpow.pop %v748
      %v750 = vmul.f32 %v736, 1.442695
      %v751 = vpow.pop %v750
      %v752 = vmul.f32 %v737, 1.442695
      %v753 = vpow.pop %v752
      %v754 = vsel %vm705, %v739, 0.0
      %755 = vadd.xlane.f32.xlu0 %v754
      %v756 = vpop.xlane.xlu0 %755
      %v757 = vsel %vm705, %v741, 0.0
      %758 = vadd.xlane.f32.xlu0 %v757
      %v759 = vpop.xlane.xlu0 %758
      %v760 = vsel %vm705, %v743, 0.0
      %761 = vadd.xlane.f32.xlu0 %v760
      %v762 = vpop.xlane.xlu0 %761
      %v763 = vsel %vm705, %v745, 0.0
      %764 = vadd.xlane.f32.xlu0 %v763
      %v765 = vpop.xlane.xlu0 %764
      %v766 = vsel %vm705, %v747, 0.0
      %767 = vadd.xlane.f32.xlu0 %v766
      %v768 = vpop.xlane.xlu0 %767
      %v769 = vsel %vm705, %v749, 0.0
      %770 = vadd.xlane.f32.xlu0 %v769
      %v771 = vpop.xlane.xlu0 %770
      %v772 = vsel %vm705, %v751, 0.0
      %773 = vadd.xlane.f32.xlu0 %v772
      %v774 = vpop.xlane.xlu0 %773
      %v775 = vsel %vm705, %v753, 0.0
      %776 = vadd.xlane.f32.xlu0 %v775
      %v777 = vpop.xlane.xlu0 %776
      %v778 = vrcp.pop %v756
      %v779 = vrcp.pop %v759
      %v780 = vrcp.pop %v762
      %v781 = vrcp.pop %v765
      %v782 = vrcp.pop %v768
      %v783 = vrcp.pop %v771
      %v784 = vrcp.pop %v774
      %v785 = vrcp.pop %v777
      %v786 = vmul.f32 %v739, %v778
      %v787 = vmul.f32 %v741, %v779
      %v788 = vmul.f32 %v743, %v780
      %v789 = vmul.f32 %v745, %v781
      %v790 = vmul.f32 %v747, %v782
      %v791 = vmul.f32 %v749, %v783
      %v792 = vmul.f32 %v751, %v784
      %v793 = vmul.f32 %v753, %v785
      %v795 = vsel %vm705, %v786, 0
      %v798 = vsel %vm705, %v787, 0
      %800 = vmatpush.msra.mxu0 0.0
      %801 = vmatpush.msra.mxu0 0.0
      %802 = vmatpush.msra.mxu0 0.0
      %803 = vmatpush.msra.mxu0 0.0
      %804 = vmatpush.msra.mxu0 0.0
      %805 = vmatpush.msra.mxu0 0.0
      %806 = vmatpush.msra.mxu0 0.0
      %807 = vmatpush.msra.mxu0 0.0
      %808 = vmatpush.msra.mxu0 0.0
      %809 = vmatpush.msra.mxu0 0.0
      %810 = vmatpush.msra.mxu0 0.0
      %811 = vmatpush.msra.mxu0 0.0
      %812 = vmatpush.msra.mxu0 0.0
      %813 = vmatpush.msra.mxu0 0.0
      %814 = vmatpush.msra.mxu0 %v541
      %815 = vmatpush.msra.mxu0 %v540
      %816 = vmatmul.f32.gmra.mxu0 %v795
      %v817 = vpop.f32.mrf.mxu0
      %v818 = vadd.f32 0.0, %v817
      %819 = vmatmul.f32.gmra.mxu0 %v798
      %v820 = vpop.f32.mrf.mxu0
      %v821 = vadd.f32 0.0, %v820
      %822 = vdwg.mxu0
      %v824 = vsel %vm705, %v788, 0
      %v827 = vsel %vm705, %v789, 0
      %829 = vmatpush.msra.mxu0 0.0
      %830 = vmatpush.msra.mxu0 0.0
      %831 = vmatpush.msra.mxu0 0.0
      %832 = vmatpush.msra.mxu0 0.0
      %833 = vmatpush.msra.mxu0 0.0
      %834 = vmatpush.msra.mxu0 0.0
      %835 = vmatpush.msra.mxu0 0.0
      %836 = vmatpush.msra.mxu0 0.0
      %837 = vmatpush.msra.mxu0 0.0
      %838 = vmatpush.msra.mxu0 0.0
      %839 = vmatpush.msra.mxu0 0.0
      %840 = vmatpush.msra.mxu0 0.0
      %841 = vmatpush.msra.mxu0 0.0
      %842 = vmatpush.msra.mxu0 0.0
      %843 = vmatpush.msra.mxu0 %v543
      %844 = vmatpush.msra.mxu0 %v542
      %845 = vmatmul.f32.gmra.mxu0 %v824
      %v846 = vpop.f32.mrf.mxu0
      %v847 = vadd.f32 0.0, %v846
      %848 = vmatmul.f32.gmra.mxu0 %v827
      %v849 = vpop.f32.mrf.mxu0
      %v850 = vadd.f32 0.0, %v849
      %851 = vdwg.mxu0
      %v853 = vsel %vm705, %v790, 0
      %v856 = vsel %vm705, %v791, 0
      %858 = vmatpush.msra.mxu0 0.0
      %859 = vmatpush.msra.mxu0 0.0
      %860 = vmatpush.msra.mxu0 0.0
      %861 = vmatpush.msra.mxu0 0.0
      %862 = vmatpush.msra.mxu0 0.0
      %863 = vmatpush.msra.mxu0 0.0
      %864 = vmatpush.msra.mxu0 0.0
      %865 = vmatpush.msra.mxu0 0.0
      %866 = vmatpush.msra.mxu0 0.0
      %867 = vmatpush.msra.mxu0 0.0
      %868 = vmatpush.msra.mxu0 0.0
      %869 = vmatpush.msra.mxu0 0.0
      %870 = vmatpush.msra.mxu0 0.0
      %871 = vmatpush.msra.mxu0 0.0
      %872 = vmatpush.msra.mxu0 %v545
      %873 = vmatpush.msra.mxu0 %v544
      %874 = vmatmul.f32.gmra.mxu0 %v853
      %v875 = vpop.f32.mrf.mxu0
      %v876 = vadd.f32 0.0, %v875
      %877 = vmatmul.f32.gmra.mxu0 %v856
      %v878 = vpop.f32.mrf.mxu0
      %v879 = vadd.f32 0.0, %v878
      %880 = vdwg.mxu0
      %v882 = vsel %vm705, %v792, 0
      %v885 = vsel %vm705, %v793, 0
      %887 = vmatpush.msra.mxu0 0.0
      %888 = vmatpush.msra.mxu0 0.0
      %889 = vmatpush.msra.mxu0 0.0
      %890 = vmatpush.msra.mxu0 0.0
      %891 = vmatpush.msra.mxu0 0.0
      %892 = vmatpush.msra.mxu0 0.0
      %893 = vmatpush.msra.mxu0 0.0
      %894 = vmatpush.msra.mxu0 0.0
      %895 = vmatpush.msra.mxu0 0.0
      %896 = vmatpush.msra.mxu0 0.0
      %897 = vmatpush.msra.mxu0 0.0
      %898 = vmatpush.msra.mxu0 0.0
      %899 = vmatpush.msra.mxu0 0.0
      %900 = vmatpush.msra.mxu0 0.0
      %901 = vmatpush.msra.mxu0 %v547
      %902 = vmatpush.msra.mxu0 %v546
      %903 = vmatmul.f32.gmra.mxu0 %v882
      %v904 = vpop.f32.mrf.mxu0
      %v905 = vadd.f32 0.0, %v904
      %906 = vmatmul.f32.gmra.mxu0 %v885
      %v907 = vpop.f32.mrf.mxu0
      %v908 = vadd.f32 0.0, %v907
      %909 = vdwg.mxu0
      %v910 = vld [vmem:[%s5] sm:$0xff]
      %v911 = vld [vmem:[%s5 + $0x8] sm:$0xff]
      %v912 = vld [vmem:[%s5 + $0x10] sm:$0xff]
      %v913 = vld [vmem:[%s5 + $0x18] sm:$0xff]
      %v915 = vsel %vm548, %v818, 0
      %v918 = vsel %vm548, %v821, 0
      %920 = vmatpush.msra.mxu0 0.0
      %921 = vmatpush.msra.mxu0 0.0
      %922 = vmatpush.msra.mxu0 0.0
      %923 = vmatpush.msra.mxu0 0.0
      %924 = vmatpush.msra.mxu0 0.0
      %925 = vmatpush.msra.mxu0 0.0
      %926 = vmatpush.msra.mxu0 0.0
      %927 = vmatpush.msra.mxu0 0.0
      %928 = vmatpush.msra.mxu0 0.0
      %929 = vmatpush.msra.mxu0 0.0
      %930 = vmatpush.msra.mxu0 0.0
      %931 = vmatpush.msra.mxu0 0.0
      %932 = vmatpush.msra.mxu0 0.0
      %933 = vmatpush.msra.mxu0 0.0
      %934 = vmatpush.msra.mxu0 0.0
      %935 = vmatpush.msra.mxu0 %v910
      %936 = vmatmul.f32.gmra.mxu0 %v915
      %v937 = vpop.f32.mrf.mxu0
      %v938 = vadd.f32 0.0, %v937
      %939 = vmatmul.f32.gmra.mxu0 %v918
      %v940 = vpop.f32.mrf.mxu0
      %v941 = vadd.f32 0.0, %v940
      %942 = vdwg.mxu0
      %v944 = vsel %vm548, %v847, 0
      %v947 = vsel %vm548, %v850, 0
      %949 = vmatpush.msra.mxu0 0.0
      %950 = vmatpush.msra.mxu0 0.0
      %951 = vmatpush.msra.mxu0 0.0
      %952 = vmatpush.msra.mxu0 0.0
      %953 = vmatpush.msra.mxu0 0.0
      %954 = vmatpush.msra.mxu0 0.0
      %955 = vmatpush.msra.mxu0 0.0
      %956 = vmatpush.msra.mxu0 0.0
      %957 = vmatpush.msra.mxu0 0.0
      %958 = vmatpush.msra.mxu0 0.0
      %959 = vmatpush.msra.mxu0 0.0
      %960 = vmatpush.msra.mxu0 0.0
      %961 = vmatpush.msra.mxu0 0.0
      %962 = vmatpush.msra.mxu0 0.0
      %963 = vmatpush.msra.mxu0 0.0
      %964 = vmatpush.msra.mxu0 %v911
      %965 = vmatmul.f32.gmra.mxu0 %v944
      %v966 = vpop.f32.mrf.mxu0
      %v967 = vadd.f32 0.0, %v966
      %968 = vmatmul.f32.gmra.mxu0 %v947
      %v969 = vpop.f32.mrf.mxu0
      %v970 = vadd.f32 0.0, %v969
      %971 = vdwg.mxu0
      %v973 = vsel %vm548, %v876, 0
      %v976 = vsel %vm548, %v879, 0
      %978 = vmatpush.msra.mxu0 0.0
      %979 = vmatpush.msra.mxu0 0.0
      %980 = vmatpush.msra.mxu0 0.0
      %981 = vmatpush.msra.mxu0 0.0
      %982 = vmatpush.msra.mxu0 0.0
      %983 = vmatpush.msra.mxu0 0.0
      %984 = vmatpush.msra.mxu0 0.0
      %985 = vmatpush.msra.mxu0 0.0
      %986 = vmatpush.msra.mxu0 0.0
      %987 = vmatpush.msra.mxu0 0.0
      %988 = vmatpush.msra.mxu0 0.0
      %989 = vmatpush.msra.mxu0 0.0
      %990 = vmatpush.msra.mxu0 0.0
      %991 = vmatpush.msra.mxu0 0.0
      %992 = vmatpush.msra.mxu0 0.0
      %993 = vmatpush.msra.mxu0 %v912
      %994 = vmatmul.f32.gmra.mxu0 %v973
      %v995 = vpop.f32.mrf.mxu0
      %v996 = vadd.f32 0.0, %v995
      %997 = vmatmul.f32.gmra.mxu0 %v976
      %v998 = vpop.f32.mrf.mxu0
      %v999 = vadd.f32 0.0, %v998
      %1000 = vdwg.mxu0
      %v1002 = vsel %vm548, %v905, 0
      %v1005 = vsel %vm548, %v908, 0
      %1007 = vmatpush.msra.mxu0 0.0
      %1008 = vmatpush.msra.mxu0 0.0
      %1009 = vmatpush.msra.mxu0 0.0
      %1010 = vmatpush.msra.mxu0 0.0
      %1011 = vmatpush.msra.mxu0 0.0
      %1012 = vmatpush.msra.mxu0 0.0
      %1013 = vmatpush.msra.mxu0 0.0
      %1014 = vmatpush.msra.mxu0 0.0
      %1015 = vmatpush.msra.mxu0 0.0
      %1016 = vmatpush.msra.mxu0 0.0
      %1017 = vmatpush.msra.mxu0 0.0
      %1018 = vmatpush.msra.mxu0 0.0
      %1019 = vmatpush.msra.mxu0 0.0
      %1020 = vmatpush.msra.mxu0 0.0
      %1021 = vmatpush.msra.mxu0 0.0
      %1022 = vmatpush.msra.mxu0 %v913
      %1023 = vmatmul.f32.gmra.mxu0 %v1002
      %v1024 = vpop.f32.mrf.mxu0
      %v1025 = vadd.f32 0.0, %v1024
      %1026 = vmatmul.f32.gmra.mxu0 %v1005
      %v1027 = vpop.f32.mrf.mxu0
      %v1028 = vadd.f32 0.0, %v1027
      %1029 = vdwg.mxu0
      %vm1030 = vcmask 261120
      %v1031 = vsel %vm1030, %v938, 0.0
      %v1032 = vsel %vm1030, %v967, 0.0
      %v1033 = vadd.f32 %v1031, %v1032
      %v1034 = vsel %vm1030, %v996, 0.0
      %v1035 = vadd.f32 %v1033, %v1034
      %v1036 = vsel %vm1030, %v1025, 0.0
      %v1037 = vadd.f32 %v1035, %v1036
      %v1038 = vsel %vm1030, %v941, 0.0
      %v1039 = vsel %vm1030, %v970, 0.0
      %v1040 = vadd.f32 %v1038, %v1039
      %v1041 = vsel %vm1030, %v999, 0.0
      %v1042 = vadd.f32 %v1040, %v1041
      %v1043 = vsel %vm1030, %v1028, 0.0
      %v1044 = vadd.f32 %v1042, %v1043
      %v1045 = vld [vmem:[%s6] sm:$0x1]
      %v1047 = vperm.slane %v1045, 0
      %v1049 = vadd.f32 %v1037, %v1047
      %v1050 = vadd.f32 %v1044, %v1047
      %v1051 = vld [vmem:[%s512] sm:$0xff]
      %v1052 = vld [vmem:[%s512 + $0x8] sm:$0xff]
      %v1053 = vadd.f32 %v1051, %v1049
      %v1054 = vadd.f32 %v1052, %v1050
      %v1055 = vsel %vm1030, %v1053, 0.0
      %1056 = vadd.xlane.f32.xlu0 %v1055
      %v1057 = vpop.xlane.xlu0 %1056
      %v1058 = vsel %vm1030, %v1054, 0.0
      %1059 = vadd.xlane.f32.xlu0 %v1058
      %v1060 = vpop.xlane.xlu0 %1059
      %v1061 = vrcp.pop 32.0
      %v1062 = vmul.f32 32.0, %v1061
      %v1063 = vsub.f32 1.0, %v1062
      %v1064 = vmul.f32 %v1061, %v1063
      %v1065 = vadd.f32 %v1061, %v1064
      %vm1066 = vweird.f32 %v1061
      %v1067 = vsel %vm1066, %v1061, %v1065
      %v1068 = vmul.f32 %v1057, %v1067
      %v1069 = vmul.f32 %v1060, %v1067
      %v1070 = vsub.f32 %v1053, %v1068
      %v1071 = vsub.f32 %v1054, %v1069
      %v1072 = vmul.f32 %v1070, %v1070
      %v1073 = vmul.f32 %v1071, %v1071
      %v1074 = vsel %vm1030, %v1072, 0.0
      %1075 = vadd.xlane.f32.xlu0 %v1074
      %v1076 = vpop.xlane.xlu0 %1075
      %v1077 = vsel %vm1030, %v1073, 0.0
      %1078 = vadd.xlane.f32.xlu0 %v1077
      %v1079 = vpop.xlane.xlu0 %1078
      %v1080 = vmul.f32 %v1076, %v1067
      %v1081 = vmul.f32 %v1079, %v1067
      %v1082 = vadd.f32 %v1080, 1e-05
      %v1083 = vadd.f32 %v1081, 1e-05
      %v1084 = vrsqrt.pop %v1082
      %v1085 = vmul.f32 %v1084, %v1082
      %v1086 = vmul.f32 %v1085, %v1084
      %v1087 = vmul.f32 0.5, %v1086
      %v1088 = vsub.f32 1.5, %v1087
      %v1089 = vmul.f32 %v1084, %v1088
      %vm1090 = vweird.f32 %v1082
      %vm1091 = vweird.f32 %v1084
      %vm1092 = vmor %vm1090, %vm1091
      %v1093 = vsel %vm1092, %v1084, %v1089
      %v1094 = vrsqrt.pop %v1083
      %v1095 = vmul.f32 %v1094, %v1083
      %v1096 = vmul.f32 %v1095, %v1094
      %v1097 = vmul.f32 0.5, %v1096
      %v1098 = vsub.f32 1.5, %v1097
      %v1099 = vmul.f32 %v1094, %v1098
      %vm1100 = vweird.f32 %v1083
      %vm1101 = vweird.f32 %v1094
      %vm1102 = vmor %vm1100, %vm1101
      %v1103 = vsel %vm1102, %v1094, %v1099
      %v1104 = vmul.f32 %v1070, %v1093
      %v1105 = vmul.f32 %v1071, %v1103
      %v1106 = vld [vmem:[%s7] sm:$0x1]
      %v1108 = vperm.slane %v1106, 0
      %v1110 = vmul.f32 %v1104, %v1108
      %v1111 = vmul.f32 %v1105, %v1108
      %v1112 = vld [vmem:[%s8] sm:$0x1]
      %v1114 = vperm.slane %v1112, 0
      %v1116 = vadd.f32 %v1110, %v1114
      %v1117 = vadd.f32 %v1111, %v1114
      %v1118 = vadd.f32 %v1051, %v1116
      %v1119 = vadd.f32 %v1052, %v1117
      %v1120 = vsel %vm1030, %v1118, 0.0
      %1121 = vadd.xlane.f32.xlu0 %v1120
      %v1122 = vpop.xlane.xlu0 %1121
      %v1123 = vsel %vm1030, %v1119, 0.0
      %1124 = vadd.xlane.f32.xlu0 %v1123
      %v1125 = vpop.xlane.xlu0 %1124
      %v1126 = vmul.f32 %v1122, %v1067
      %v1127 = vmul.f32 %v1125, %v1067
      %v1128 = vsub.f32 %v1118, %v1126
      %v1129 = vsub.f32 %v1119, %v1127
      %v1130 = vmul.f32 %v1128, %v1128
      %v1131 = vmul.f32 %v1129, %v1129
      %v1132 = vsel %vm1030, %v1130, 0.0
      %1133 = vadd.xlane.f32.xlu0 %v1132
      %v1134 = vpop.xlane.xlu0 %1133
      %v1135 = vsel %vm1030, %v1131, 0.0
      %1136 = vadd.xlane.f32.xlu0 %v1135
      %v1137 = vpop.xlane.xlu0 %1136
      %v1138 = vmul.f32 %v1134, %v1067
      %v1139 = vmul.f32 %v1137, %v1067
      %v1140 = vadd.f32 %v1138, 1e-05
      %v1141 = vadd.f32 %v1139, 1e-05
      %v1142 = vrsqrt.pop %v1140
      %v1143 = vmul.f32 %v1142, %v1140
      %v1144 = vmul.f32 %v1143, %v1142
      %v1145 = vmul.f32 0.5, %v1144
      %v1146 = vsub.f32 1.5, %v1145
      %v1147 = vmul.f32 %v1142, %v1146
      %vm1148 = vweird.f32 %v1140
      %vm1149 = vweird.f32 %v1142
      %vm1150 = vmor %vm1148, %vm1149
      %v1151 = vsel %vm1150, %v1142, %v1147
      %v1152 = vrsqrt.pop %v1141
      %v1153 = vmul.f32 %v1152, %v1141
      %v1154 = vmul.f32 %v1153, %v1152
      %v1155 = vmul.f32 0.5, %v1154
      %v1156 = vsub.f32 1.5, %v1155
      %v1157 = vmul.f32 %v1152, %v1156
      %vm1158 = vweird.f32 %v1141
      %vm1159 = vweird.f32 %v1152
      %vm1160 = vmor %vm1158, %vm1159
      %v1161 = vsel %vm1160, %v1152, %v1157
      %v1162 = vmul.f32 %v1128, %v1151
      %v1163 = vmul.f32 %v1129, %v1161
      %v1164 = vld [vmem:[%s9] sm:$0x1]
      %v1166 = vperm.slane %v1164, 0
      %v1168 = vmul.f32 %v1162, %v1166
      %v1169 = vmul.f32 %v1163, %v1166
      %v1170 = vld [vmem:[%s10] sm:$0x1]
      %v1172 = vperm.slane %v1170, 0
      %v1174 = vadd.f32 %v1168, %v1172
      %v1175 = vadd.f32 %v1169, %v1172
      %1176 = vst.msk [vmem:[%s522] sm:$0xff] %vm1030, %v1174
      %1177 = vst.msk [vmem:[%s522 + $0x8] sm:$0xff] %vm1030, %v1175
      %s1178 = smul.u32 2, %s27
      %p1179 = scmp.lt.s32.totalorder %s26, 1
      %s1180 = scalar_select %p1179, %s26, 1
      %p1181 = scmp.lt.s32.totalorder %s1178, 1
      %s1182 = scalar_select %p1181, %s1178, 1
      %s1183 = smul.addr %s1180, 2
      %s1184 = sadd.s32 %s1182, %s1183
      %s1185 = smul.addr %s1184, 8
      %s1186 = scalar_lea.vmem %s11, %s1185
      // Predicated region
      $region65: #{encoder_forward.9} parent=63 // pred_check
        %p1187 = pneg %p314
      $region66: #{encoder_forward.9} parent=63 // pred_check_branch
        %1189 = sbr.rel (%p1187) target = $region68
      $region67: #{encoder_forward.9} parent=63 // pred_region
        %s1190 = smul.u32 2, %s27
      $region68: #{encoder_forward.9} parent=63 // pred_fallthru
        _
    $region64: #{encoder_forward.9} parent=5 // pred_fallthru
      _
    %p1191 = scmp.le.s32.totalorder 2, %s17
    // Predicated region
    $region69: #{encoder_forward.9} parent=5 // pred_check
      %p1192 = pneg %p1191
    $region70: #{encoder_forward.9} parent=5 // pred_check_branch
      %1194 = sbr.rel (%p1192) target = $region72
    $region71: #{encoder_forward.9} parent=5 // pred_region
      %s1195 = ssub.s32 %s17, 2
      // Predicated region
      $region73: #{encoder_forward.9} parent=71 // pred_check
        %p1196 = pneg %p320
      $region74: #{encoder_forward.9} parent=71 // pred_check_branch
        %1198 = sbr.rel (%p1196) target = $region76
      $region75: #{encoder_forward.9} parent=71 // pred_region
        %s1199 = smul.u32 2, %s29
        %p1200 = scmp.lt.s32.totalorder %s28, 1
        %s1201 = scalar_select %p1200, %s28, 1
        %p1202 = scmp.lt.s32.totalorder %s1199, 1
        %s1203 = scalar_select %p1202, %s1199, 1
        %s1204 = smul.addr %s1201, 2
        %s1205 = sadd.s32 %s1203, %s1204
        %s1206 = smul.addr %s1205, 8
        %s1207 = scalar_lea.vmem %s11, %s1206
      $region76: #{encoder_forward.9} parent=71 // pred_fallthru
        _
    $region72: #{encoder_forward.9} parent=5 // pred_fallthru
      _
  $region6: #{encoder_forward.9} parent=0 // loop_footer
    %s21 = sadd.s32 1, %s17
  $region7: #{encoder_forward.9} parent=0 // loop_footer_branch
    %16 = sbr.rel target = $region3
  $region8: #{encoder_forward.9} parent=0 // loop_exit
    _

// kernel: encoder_forward.10
$region0: #{encoder_forward.10}
  #allocation0 [shape = 'u32[]', space=smem, size = 0x4, offset = 0x4, fixed_abs, tag = 'smem constant byte address 0x4 - core index']
  #allocation1 [shape = 'u32[72,128]{1,0:T(1,128)}', space=vmem, size = 0x9000, scoped, tag = 'internal scratch']
  #allocation2 [shape = 'f32[32,64]{1,0:T(8,128)}', space=vmem, size = 0x4000, scoped, tag = 'scratch operand']
  %s0 = inlined_call_operand.vmem [shape: f32[32,32], index: 0, kind: input, shape index: {}]
  %s1 = inlined_call_operand.vmem [shape: f32[32,64], index: 1, kind: input, shape index: {}]
  %s2 = inlined_call_operand.vmem [shape: f32[1,64], index: 2, kind: input, shape index: {}]
  %s3 = inlined_call_operand.vmem [shape: f32[64,32], index: 3, kind: input, shape index: {}]
  %s4 = inlined_call_operand.vmem [shape: f32[1,32], index: 4, kind: input, shape index: {}]
  %s5 = inlined_call_operand.vmem [shape: f32[1,32], index: 5, kind: input, shape index: {}]
  %s6 = inlined_call_operand.vmem [shape: f32[1,32], index: 6, kind: input, shape index: {}]
  %s7 = inlined_call_operand.vmem [shape: f32[32,32], index: 7, kind: output, shape index: {}]
  %s8 = sld [smem:[#allocation0]]
  $region38: #{encoder_forward.10} parent=0
    _
  %s10 = ssub.s32 1, %s8
  %s11 = scalar_select 0, %s10, %s8
  // Predicated region
  $region2: #{encoder_forward.10} parent=0 // pred_check
    _
  $region3: #{encoder_forward.10} parent=0 // pred_check_branch
    %13 = sbr.rel (0) target = $region5
  $region4: #{encoder_forward.10} parent=0 // pred_region
    _
  $region5: #{encoder_forward.10} parent=0 // pred_fallthru
    _
  // Predicated region
  $region6: #{encoder_forward.10} parent=0 // pred_check
    _
  $region7: #{encoder_forward.10} parent=0 // pred_check_branch
    %15 = sbr.rel (0) target = $region9
  $region8: #{encoder_forward.10} parent=0 // pred_region
    _
  $region9: #{encoder_forward.10} parent=0 // pred_fallthru
    _
  // Predicated region
  $region10: #{encoder_forward.10} parent=0 // pred_check
    _
  $region11: #{encoder_forward.10} parent=0 // pred_check_branch
    %17 = sbr.rel (0) target = $region13
  $region12: #{encoder_forward.10} parent=0 // pred_region
    _
  $region13: #{encoder_forward.10} parent=0 // pred_fallthru
    _
  // Predicated region
  $region14: #{encoder_forward.10} parent=0 // pred_check
    _
  $region15: #{encoder_forward.10} parent=0 // pred_check_branch
    %19 = sbr.rel (0) target = $region17
  $region16: #{encoder_forward.10} parent=0 // pred_region
    _
  $region17: #{encoder_forward.10} parent=0 // pred_fallthru
    _
  // Predicated region
  $region18: #{encoder_forward.10} parent=0 // pred_check
    _
  $region19: #{encoder_forward.10} parent=0 // pred_check_branch
    %21 = sbr.rel (0) target = $region21
  $region20: #{encoder_forward.10} parent=0 // pred_region
    _
  $region21: #{encoder_forward.10} parent=0 // pred_fallthru
    _
  // Predicated region
  $region22: #{encoder_forward.10} parent=0 // pred_check
    _
  $region23: #{encoder_forward.10} parent=0 // pred_check_branch
    %23 = sbr.rel (0) target = $region25
  $region24: #{encoder_forward.10} parent=0 // pred_region
    _
  $region25: #{encoder_forward.10} parent=0 // pred_fallthru
    _
  // Predicated region
  $region26: #{encoder_forward.10} parent=0 // pred_check
    _
  $region27: #{encoder_forward.10} parent=0 // pred_check_branch
    %25 = sbr.rel (0) target = $region29
  $region28: #{encoder_forward.10} parent=0 // pred_region
    _
  $region29: #{encoder_forward.10} parent=0 // pred_fallthru
    _
  %v26 = vld [vmem:[%s0] sm:$0xff]
  %v27 = vld [vmem:[%s0 + $0x8] sm:$0xff]
  %v28 = vld [vmem:[%s0 + $0x10] sm:$0xff]
  %v29 = vld [vmem:[%s0 + $0x18] sm:$0xff]
  %v30 = vld [vmem:[%s1] sm:$0xff]
  %v31 = vld [vmem:[%s1 + $0x8] sm:$0xff]
  %v32 = vld [vmem:[%s1 + $0x10] sm:$0xff]
  %v33 = vld [vmem:[%s1 + $0x18] sm:$0xff]
  %v34 = vld [vmem:[%s2] sm:$0x1]
  %v36 = vperm.slane %v34, 0
  %vm38 = vcmask 261120
  %v40 = vsel %vm38, %v26, 0
  %v43 = vsel %vm38, %v27, 0
  %v46 = vsel %vm38, %v28, 0
  %v49 = vsel %vm38, %v29, 0
  %51 = vmatpush.msra.mxu0 0.0
  %52 = vmatpush.msra.mxu0 0.0
  %53 = vmatpush.msra.mxu0 0.0
  %54 = vmatpush.msra.mxu0 0.0
  %55 = vmatpush.msra.mxu0 0.0
  %56 = vmatpush.msra.mxu0 0.0
  %57 = vmatpush.msra.mxu0 0.0
  %58 = vmatpush.msra.mxu0 0.0
  %59 = vmatpush.msra.mxu0 0.0
  %60 = vmatpush.msra.mxu0 0.0
  %61 = vmatpush.msra.mxu0 0.0
  %62 = vmatpush.msra.mxu0 0.0
  %63 = vmatpush.msra.mxu0 %v33
  %64 = vmatpush.msra.mxu0 %v32
  %65 = vmatpush.msra.mxu0 %v31
  %66 = vmatpush.msra.mxu0 %v30
  %67 = vmatmul.f32.gmra.mxu0 %v40
  %v68 = vpop.f32.mrf.mxu0
  %v69 = vadd.f32 %v36, %v68
  %70 = vmatmul.f32.gmra.mxu0 %v43
  %v71 = vpop.f32.mrf.mxu0
  %v72 = vadd.f32 %v36, %v71
  %73 = vmatmul.f32.gmra.mxu0 %v46
  %v74 = vpop.f32.mrf.mxu0
  %v75 = vadd.f32 %v36, %v74
  %76 = vmatmul.f32.gmra.mxu0 %v49
  %v77 = vpop.f32.mrf.mxu0
  %v78 = vadd.f32 %v36, %v77
  %79 = vdwg.mxu0
  %v80 = vmax.f32 %v69, 0.0
  %v81 = vmax.f32 %v72, 0.0
  %v82 = vmax.f32 %v75, 0.0
  %v83 = vmax.f32 %v78, 0.0
  %vm84 = vcmask 523264
  %85 = vst.msk [vmem:[#allocation2] sm:$0xff] %vm84, %v80
  %86 = vst.msk [vmem:[#allocation2 + $0x8] sm:$0xff] %vm84, %v81
  %87 = vst.msk [vmem:[#allocation2 + $0x10] sm:$0xff] %vm84, %v82
  %88 = vst.msk [vmem:[#allocation2 + $0x18] sm:$0xff] %vm84, %v83
  %v89 = vld [vmem:[#allocation2] sm:$0xff]
  %v90 = vld [vmem:[#allocation2 + $0x8] sm:$0xff]
  %v91 = vld [vmem:[#allocation2 + $0x10] sm:$0xff]
  %v92 = vld [vmem:[#allocation2 + $0x18] sm:$0xff]
  %v93 = vld [vmem:[%s3] sm:$0xff]
  %v94 = vld [vmem:[%s3 + $0x8] sm:$0xff]
  %v95 = vld [vmem:[%s3 + $0x10] sm:$0xff]
  %v96 = vld [vmem:[%s3 + $0x18] sm:$0xff]
  %v97 = vld [vmem:[%s3 + $0x20] sm:$0xff]
  %v98 = vld [vmem:[%s3 + $0x28] sm:$0xff]
  %v99 = vld [vmem:[%s3 + $0x30] sm:$0xff]
  %v100 = vld [vmem:[%s3 + $0x38] sm:$0xff]
  %v101 = vld [vmem:[%s4] sm:$0x1]
  %v103 = vperm.slane %v101, 0
  %v106 = vsel %vm84, %v89, 0
  %v109 = vsel %vm84, %v90, 0
  %v112 = vsel %vm84, %v91, 0
  %v115 = vsel %vm84, %v92, 0
  %117 = vmatpush.msra.mxu0 0.0
  %118 = vmatpush.msra.mxu0 0.0
  %119 = vmatpush.msra.mxu0 0.0
  %120 = vmatpush.msra.mxu0 0.0
  %121 = vmatpush.msra.mxu0 0.0
  %122 = vmatpush.msra.mxu0 0.0
  %123 = vmatpush.msra.mxu0 0.0
  %124 = vmatpush.msra.mxu0 0.0
  %125 = vmatpush.msra.mxu0 %v100
  %126 = vmatpush.msra.mxu0 %v99
  %127 = vmatpush.msra.mxu0 %v98
  %128 = vmatpush.msra.mxu0 %v97
  %129 = vmatpush.msra.mxu0 %v96
  %130 = vmatpush.msra.mxu0 %v95
  %131 = vmatpush.msra.mxu0 %v94
  %132 = vmatpush.msra.mxu0 %v93
  %133 = vmatmul.f32.gmra.mxu0 %v106
  %v134 = vpop.f32.mrf.mxu0
  %v135 = vadd.f32 %v103, %v134
  %136 = vmatmul.f32.gmra.mxu0 %v109
  %v137 = vpop.f32.mrf.mxu0
  %v138 = vadd.f32 %v103, %v137
  %139 = vmatmul.f32.gmra.mxu0 %v112
  %v140 = vpop.f32.mrf.mxu0
  %v141 = vadd.f32 %v103, %v140
  %142 = vmatmul.f32.gmra.mxu0 %v115
  %v143 = vpop.f32.mrf.mxu0
  %v144 = vadd.f32 %v103, %v143
  %145 = vdwg.mxu0
  %v146 = vld [vmem:[%s0] sm:$0xff]
  %v147 = vld [vmem:[%s0 + $0x8] sm:$0xff]
  %v148 = vld [vmem:[%s0 + $0x10] sm:$0xff]
  %v149 = vld [vmem:[%s0 + $0x18] sm:$0xff]
  %v150 = vadd.f32 %v146, %v135
  %v151 = vadd.f32 %v147, %v138
  %v152 = vadd.f32 %v148, %v141
  %v153 = vadd.f32 %v149, %v144
  %v154 = vsel %vm38, %v150, 0.0
  %155 = vadd.xlane.f32.xlu0 %v154
  %v156 = vpop.xlane.xlu0 %155
  %v157 = vsel %vm38, %v151, 0.0
  %158 = vadd.xlane.f32.xlu0 %v157
  %v159 = vpop.xlane.xlu0 %158
  %v160 = vsel %vm38, %v152, 0.0
  %161 = vadd.xlane.f32.xlu0 %v160
  %v162 = vpop.xlane.xlu0 %161
  %v163 = vsel %vm38, %v153, 0.0
  %164 = vadd.xlane.f32.xlu0 %v163
  %v165 = vpop.xlane.xlu0 %164
  %v166 = vrcp.pop 32.0
  %v167 = vmul.f32 32.0, %v166
  %v168 = vsub.f32 1.0, %v167
  %v169 = vmul.f32 %v166, %v168
  %v170 = vadd.f32 %v166, %v169
  %vm171 = vweird.f32 %v166
  %v172 = vsel %vm171, %v166, %v170
  %v173 = vmul.f32 %v156, %v172
  %v174 = vmul.f32 %v159, %v172
  %v175 = vmul.f32 %v162, %v172
  %v176 = vmul.f32 %v165, %v172
  %v177 = vsub.f32 %v150, %v173
  %v178 = vsub.f32 %v151, %v174
  %v179 = vsub.f32 %v152, %v175
  %v180 = vsub.f32 %v153, %v176
  %v181 = vmul.f32 %v177, %v177
  %v182 = vmul.f32 %v178, %v178
  %v183 = vmul.f32 %v179, %v179
  %v184 = vmul.f32 %v180, %v180
  %v185 = vsel %vm38, %v181, 0.0
  %186 = vadd.xlane.f32.xlu0 %v185
  %v187 = vpop.xlane.xlu0 %186
  %v188 = vsel %vm38, %v182, 0.0
  %189 = vadd.xlane.f32.xlu0 %v188
  %v190 = vpop.xlane.xlu0 %189
  %v191 = vsel %vm38, %v183, 0.0
  %192 = vadd.xlane.f32.xlu0 %v191
  %v193 = vpop.xlane.xlu0 %192
  %v194 = vsel %vm38, %v184, 0.0
  %195 = vadd.xlane.f32.xlu0 %v194
  %v196 = vpop.xlane.xlu0 %195
  %v197 = vmul.f32 %v187, %v172
  %v198 = vmul.f32 %v190, %v172
  %v199 = vmul.f32 %v193, %v172
  %v200 = vmul.f32 %v196, %v172
  %v201 = vadd.f32 %v197, 1e-05
  %v202 = vadd.f32 %v198, 1e-05
  %v203 = vadd.f32 %v199, 1e-05
  %v204 = vadd.f32 %v200, 1e-05
  %v205 = vrsqrt.pop %v201
  %v206 = vmul.f32 %v205, %v201
  %v207 = vmul.f32 %v206, %v205
  %v208 = vmul.f32 0.5, %v207
  %v209 = vsub.f32 1.5, %v208
  %v210 = vmul.f32 %v205, %v209
  %vm211 = vweird.f32 %v201
  %vm212 = vweird.f32 %v205
  %vm213 = vmor %vm211, %vm212
  %v214 = vsel %vm213, %v205, %v210
  %v215 = vrsqrt.pop %v202
  %v216 = vmul.f32 %v215, %v202
  %v217 = vmul.f32 %v216, %v215
  %v218 = vmul.f32 0.5, %v217
  %v219 = vsub.f32 1.5, %v218
  %v220 = vmul.f32 %v215, %v219
  %vm221 = vweird.f32 %v202
  %vm222 = vweird.f32 %v215
  %vm223 = vmor %vm221, %vm222
  %v224 = vsel %vm223, %v215, %v220
  %v225 = vrsqrt.pop %v203
  %v226 = vmul.f32 %v225, %v203
  %v227 = vmul.f32 %v226, %v225
  %v228 = vmul.f32 0.5, %v227
  %v229 = vsub.f32 1.5, %v228
  %v230 = vmul.f32 %v225, %v229
  %vm231 = vweird.f32 %v203
  %vm232 = vweird.f32 %v225
  %vm233 = vmor %vm231, %vm232
  %v234 = vsel %vm233, %v225, %v230
  %v235 = vrsqrt.pop %v204
  %v236 = vmul.f32 %v235, %v204
  %v237 = vmul.f32 %v236, %v235
  %v238 = vmul.f32 0.5, %v237
  %v239 = vsub.f32 1.5, %v238
  %v240 = vmul.f32 %v235, %v239
  %vm241 = vweird.f32 %v204
  %vm242 = vweird.f32 %v235
  %vm243 = vmor %vm241, %vm242
  %v244 = vsel %vm243, %v235, %v240
  %v245 = vmul.f32 %v177, %v214
  %v246 = vmul.f32 %v178, %v224
  %v247 = vmul.f32 %v179, %v234
  %v248 = vmul.f32 %v180, %v244
  %v249 = vld [vmem:[%s5] sm:$0x1]
  %v251 = vperm.slane %v249, 0
  %v253 = vmul.f32 %v245, %v251
  %v254 = vmul.f32 %v246, %v251
  %v255 = vmul.f32 %v247, %v251
  %v256 = vmul.f32 %v248, %v251
  %v257 = vld [vmem:[%s6] sm:$0x1]
  %v259 = vperm.slane %v257, 0
  %v261 = vadd.f32 %v253, %v259
  %v262 = vadd.f32 %v254, %v259
  %v263 = vadd.f32 %v255, %v259
  %v264 = vadd.f32 %v256, %v259
  %265 = vst.msk [vmem:[%s7] sm:$0xff] %vm38, %v261
  %266 = vst.msk [vmem:[%s7 + $0x8] sm:$0xff] %vm38, %v262
  %267 = vst.msk [vmem:[%s7 + $0x10] sm:$0xff] %vm38, %v263
  %268 = vst.msk [vmem:[%s7 + $0x18] sm:$0xff] %vm38, %v264
  // Predicated region
  $region30: #{encoder_forward.10} parent=0 // pred_check
    _
  $region31: #{encoder_forward.10} parent=0 // pred_check_branch
    %270 = sbr.rel (0) target = $region33
  $region32: #{encoder_forward.10} parent=0 // pred_region
    _
  $region33: #{encoder_forward.10} parent=0 // pred_fallthru
    _
  // Predicated region
  $region34: #{encoder_forward.10} parent=0 // pred_check
    _
  $region35: #{encoder_forward.10} parent=0 // pred_check_branch
    %272 = sbr.rel (0) target = $region37
  $region36: #{encoder_forward.10} parent=0 // pred_region
    _
  $region37: #{encoder_forward.10} parent=0 // pred_fallthru
    _

// kernel: encoder_forward.13
$region0: #{encoder_forward.13}
  #allocation0 [shape = 'u32[]', space=smem, size = 0x4, offset = 0x4, fixed_abs, tag = 'smem constant byte address 0x4 - core index']
  #allocation1 [shape = 'u32[72,128]{1,0:T(1,128)}', space=vmem, size = 0x9000, scoped, tag = 'internal scratch']
  #allocation2 [shape = 'f32[32,64]{1,0:T(8,128)}', space=vmem, size = 0x4000, scoped, tag = 'scratch operand']
  %s0 = inlined_call_operand.vmem [shape: f32[32,32], index: 0, kind: input, shape index: {}]
  %s1 = inlined_call_operand.vmem [shape: f32[32,64], index: 1, kind: input, shape index: {}]
  %s2 = inlined_call_operand.vmem [shape: f32[1,64], index: 2, kind: input, shape index: {}]
  %s3 = inlined_call_operand.vmem [shape: f32[64,32], index: 3, kind: input, shape index: {}]
  %s4 = inlined_call_operand.vmem [shape: f32[1,32], index: 4, kind: input, shape index: {}]
  %s5 = inlined_call_operand.vmem [shape: f32[1,32], index: 5, kind: input, shape index: {}]
  %s6 = inlined_call_operand.vmem [shape: f32[1,32], index: 6, kind: input, shape index: {}]
  %s7 = inlined_call_operand.hbm [shape: f32[32,32], index: 7, kind: output, shape index: {}]
  %s8 = sld [smem:[#allocation0]]
  $region38: #{encoder_forward.13} parent=0
    _
  %s10 = ssub.s32 1, %s8
  %s11 = scalar_select 0, %s10, %s8
  $region1: #{encoder_forward.13} parent=0
    #allocation3 [shape = 'u8[16384]{0}', space=vmem, size = 0x4000, scoped, tag = 'output window, operand 0, single buffered']
    #allocation4 [shape = 's32[1]{0}', space=sflag, size = 0x4, scoped, tag = 'scoped memory for encoder_forward.13']
    %12 = vsyncpa [#allocation4], 0
    // Predicated region
    $region2: #{encoder_forward.13} parent=1 // pred_check
      _
    $region3: #{encoder_forward.13} parent=1 // pred_check_branch
      %14 = sbr.rel (0) target = $region5
    $region4: #{encoder_forward.13} parent=1 // pred_region
      _
    $region5: #{encoder_forward.13} parent=1 // pred_fallthru
      _
    // Predicated region
    $region6: #{encoder_forward.13} parent=1 // pred_check
      _
    $region7: #{encoder_forward.13} parent=1 // pred_check_branch
      %16 = sbr.rel (0) target = $region9
    $region8: #{encoder_forward.13} parent=1 // pred_region
      _
    $region9: #{encoder_forward.13} parent=1 // pred_fallthru
      _
    // Predicated region
    $region10: #{encoder_forward.13} parent=1 // pred_check
      _
    $region11: #{encoder_forward.13} parent=1 // pred_check_branch
      %18 = sbr.rel (0) target = $region13
    $region12: #{encoder_forward.13} parent=1 // pred_region
      _
    $region13: #{encoder_forward.13} parent=1 // pred_fallthru
      _
    // Predicated region
    $region14: #{encoder_forward.13} parent=1 // pred_check
      _
    $region15: #{encoder_forward.13} parent=1 // pred_check_branch
      %20 = sbr.rel (0) target = $region17
    $region16: #{encoder_forward.13} parent=1 // pred_region
      _
    $region17: #{encoder_forward.13} parent=1 // pred_fallthru
      _
    // Predicated region
    $region18: #{encoder_forward.13} parent=1 // pred_check
      _
    $region19: #{encoder_forward.13} parent=1 // pred_check_branch
      %22 = sbr.rel (0) target = $region21
    $region20: #{encoder_forward.13} parent=1 // pred_region
      _
    $region21: #{encoder_forward.13} parent=1 // pred_fallthru
      _
    // Predicated region
    $region22: #{encoder_forward.13} parent=1 // pred_check
      _
    $region23: #{encoder_forward.13} parent=1 // pred_check_branch
      %24 = sbr.rel (0) target = $region25
    $region24: #{encoder_forward.13} parent=1 // pred_region
      _
    $region25: #{encoder_forward.13} parent=1 // pred_fallthru
      _
    // Predicated region
    $region26: #{encoder_forward.13} parent=1 // pred_check
      _
    $region27: #{encoder_forward.13} parent=1 // pred_check_branch
      %26 = sbr.rel (0) target = $region29
    $region28: #{encoder_forward.13} parent=1 // pred_region
      _
    $region29: #{encoder_forward.13} parent=1 // pred_fallthru
      _
    %v27 = vld [vmem:[%s0] sm:$0xff]
    %v28 = vld [vmem:[%s0 + $0x8] sm:$0xff]
    %v29 = vld [vmem:[%s0 + $0x10] sm:$0xff]
    %v30 = vld [vmem:[%s0 + $0x18] sm:$0xff]
    %v31 = vld [vmem:[%s1] sm:$0xff]
    %v32 = vld [vmem:[%s1 + $0x8] sm:$0xff]
    %v33 = vld [vmem:[%s1 + $0x10] sm:$0xff]
    %v34 = vld [vmem:[%s1 + $0x18] sm:$0xff]
    %v35 = vld [vmem:[%s2] sm:$0x1]
    %v37 = vperm.slane %v35, 0
    %vm39 = vcmask 261120
    %v41 = vsel %vm39, %v27, 0
    %v44 = vsel %vm39, %v28, 0
    %v47 = vsel %vm39, %v29, 0
    %v50 = vsel %vm39, %v30, 0
    %52 = vmatpush.msra.mxu0 0.0
    %53 = vmatpush.msra.mxu0 0.0
    %54 = vmatpush.msra.mxu0 0.0
    %55 = vmatpush.msra.mxu0 0.0
    %56 = vmatpush.msra.mxu0 0.0
    %57 = vmatpush.msra.mxu0 0.0
    %58 = vmatpush.msra.mxu0 0.0
    %59 = vmatpush.msra.mxu0 0.0
    %60 = vmatpush.msra.mxu0 0.0
    %61 = vmatpush.msra.mxu0 0.0
    %62 = vmatpush.msra.mxu0 0.0
    %63 = vmatpush.msra.mxu0 0.0
    %64 = vmatpush.msra.mxu0 %v34
    %65 = vmatpush.msra.mxu0 %v33
    %66 = vmatpush.msra.mxu0 %v32
    %67 = vmatpush.msra.mxu0 %v31
    %68 = vmatmul.f32.gmra.mxu0 %v41
    %v69 = vpop.f32.mrf.mxu0
    %v70 = vadd.f32 %v37, %v69
    %71 = vmatmul.f32.gmra.mxu0 %v44
    %v72 = vpop.f32.mrf.mxu0
    %v73 = vadd.f32 %v37, %v72
    %74 = vmatmul.f32.gmra.mxu0 %v47
    %v75 = vpop.f32.mrf.mxu0
    %v76 = vadd.f32 %v37, %v75
    %77 = vmatmul.f32.gmra.mxu0 %v50
    %v78 = vpop.f32.mrf.mxu0
    %v79 = vadd.f32 %v37, %v78
    %80 = vdwg.mxu0
    %v81 = vmax.f32 %v70, 0.0
    %v82 = vmax.f32 %v73, 0.0
    %v83 = vmax.f32 %v76, 0.0
    %v84 = vmax.f32 %v79, 0.0
    %vm85 = vcmask 523264
    %86 = vst.msk [vmem:[#allocation2] sm:$0xff] %vm85, %v81
    %87 = vst.msk [vmem:[#allocation2 + $0x8] sm:$0xff] %vm85, %v82
    %88 = vst.msk [vmem:[#allocation2 + $0x10] sm:$0xff] %vm85, %v83
    %89 = vst.msk [vmem:[#allocation2 + $0x18] sm:$0xff] %vm85, %v84
    %v90 = vld [vmem:[#allocation2] sm:$0xff]
    %v91 = vld [vmem:[#allocation2 + $0x8] sm:$0xff]
    %v92 = vld [vmem:[#allocation2 + $0x10] sm:$0xff]
    %v93 = vld [vmem:[#allocation2 + $0x18] sm:$0xff]
    %v94 = vld [vmem:[%s3] sm:$0xff]
    %v95 = vld [vmem:[%s3 + $0x8] sm:$0xff]
    %v96 = vld [vmem:[%s3 + $0x10] sm:$0xff]
    %v97 = vld [vmem:[%s3 + $0x18] sm:$0xff]
    %v98 = vld [vmem:[%s3 + $0x20] sm:$0xff]
    %v99 = vld [vmem:[%s3 + $0x28] sm:$0xff]
    %v100 = vld [vmem:[%s3 + $0x30] sm:$0xff]
    %v101 = vld [vmem:[%s3 + $0x38] sm:$0xff]
    %v102 = vld [vmem:[%s4] sm:$0x1]
    %v104 = vperm.slane %v102, 0
    %v107 = vsel %vm85, %v90, 0
    %v110 = vsel %vm85, %v91, 0
    %v113 = vsel %vm85, %v92, 0
    %v116 = vsel %vm85, %v93, 0
    %118 = vmatpush.msra.mxu0 0.0
    %119 = vmatpush.msra.mxu0 0.0
    %120 = vmatpush.msra.mxu0 0.0
    %121 = vmatpush.msra.mxu0 0.0
    %122 = vmatpush.msra.mxu0 0.0
    %123 = vmatpush.msra.mxu0 0.0
    %124 = vmatpush.msra.mxu0 0.0
    %125 = vmatpush.msra.mxu0 0.0
    %126 = vmatpush.msra.mxu0 %v101
    %127 = vmatpush.msra.mxu0 %v100
    %128 = vmatpush.msra.mxu0 %v99
    %129 = vmatpush.msra.mxu0 %v98
    %130 = vmatpush.msra.mxu0 %v97
    %131 = vmatpush.msra.mxu0 %v96
    %132 = vmatpush.msra.mxu0 %v95
    %133 = vmatpush.msra.mxu0 %v94
    %134 = vmatmul.f32.gmra.mxu0 %v107
    %v135 = vpop.f32.mrf.mxu0
    %v136 = vadd.f32 %v104, %v135
    %137 = vmatmul.f32.gmra.mxu0 %v110
    %v138 = vpop.f32.mrf.mxu0
    %v139 = vadd.f32 %v104, %v138
    %140 = vmatmul.f32.gmra.mxu0 %v113
    %v141 = vpop.f32.mrf.mxu0
    %v142 = vadd.f32 %v104, %v141
    %143 = vmatmul.f32.gmra.mxu0 %v116
    %v144 = vpop.f32.mrf.mxu0
    %v145 = vadd.f32 %v104, %v144
    %146 = vdwg.mxu0
    %v147 = vld [vmem:[%s0] sm:$0xff]
    %v148 = vld [vmem:[%s0 + $0x8] sm:$0xff]
    %v149 = vld [vmem:[%s0 + $0x10] sm:$0xff]
    %v150 = vld [vmem:[%s0 + $0x18] sm:$0xff]
    %v151 = vadd.f32 %v147, %v136
    %v152 = vadd.f32 %v148, %v139
    %v153 = vadd.f32 %v149, %v142
    %v154 = vadd.f32 %v150, %v145
    %v155 = vsel %vm39, %v151, 0.0
    %156 = vadd.xlane.f32.xlu0 %v155
    %v157 = vpop.xlane.xlu0 %156
    %v158 = vsel %vm39, %v152, 0.0
    %159 = vadd.xlane.f32.xlu0 %v158
    %v160 = vpop.xlane.xlu0 %159
    %v161 = vsel %vm39, %v153, 0.0
    %162 = vadd.xlane.f32.xlu0 %v161
    %v163 = vpop.xlane.xlu0 %162
    %v164 = vsel %vm39, %v154, 0.0
    %165 = vadd.xlane.f32.xlu0 %v164
    %v166 = vpop.xlane.xlu0 %165
    %v167 = vrcp.pop 32.0
    %v168 = vmul.f32 32.0, %v167
    %v169 = vsub.f32 1.0, %v168
    %v170 = vmul.f32 %v167, %v169
    %v171 = vadd.f32 %v167, %v170
    %vm172 = vweird.f32 %v167
    %v173 = vsel %vm172, %v167, %v171
    %v174 = vmul.f32 %v157, %v173
    %v175 = vmul.f32 %v160, %v173
    %v176 = vmul.f32 %v163, %v173
    %v177 = vmul.f32 %v166, %v173
    %v178 = vsub.f32 %v151, %v174
    %v179 = vsub.f32 %v152, %v175
    %v180 = vsub.f32 %v153, %v176
    %v181 = vsub.f32 %v154, %v177
    %v182 = vmul.f32 %v178, %v178
    %v183 = vmul.f32 %v179, %v179
    %v184 = vmul.f32 %v180, %v180
    %v185 = vmul.f32 %v181, %v181
    %v186 = vsel %vm39, %v182, 0.0
    %187 = vadd.xlane.f32.xlu0 %v186
    %v188 = vpop.xlane.xlu0 %187
    %v189 = vsel %vm39, %v183, 0.0
    %190 = vadd.xlane.f32.xlu0 %v189
    %v191 = vpop.xlane.xlu0 %190
    %v192 = vsel %vm39, %v184, 0.0
    %193 = vadd.xlane.f32.xlu0 %v192
    %v194 = vpop.xlane.xlu0 %193
    %v195 = vsel %vm39, %v185, 0.0
    %196 = vadd.xlane.f32.xlu0 %v195
    %v197 = vpop.xlane.xlu0 %196
    %v198 = vmul.f32 %v188, %v173
    %v199 = vmul.f32 %v191, %v173
    %v200 = vmul.f32 %v194, %v173
    %v201 = vmul.f32 %v197, %v173
    %v202 = vadd.f32 %v198, 1e-05
    %v203 = vadd.f32 %v199, 1e-05
    %v204 = vadd.f32 %v200, 1e-05
    %v205 = vadd.f32 %v201, 1e-05
    %v206 = vrsqrt.pop %v202
    %v207 = vmul.f32 %v206, %v202
    %v208 = vmul.f32 %v207, %v206
    %v209 = vmul.f32 0.5, %v208
    %v210 = vsub.f32 1.5, %v209
    %v211 = vmul.f32 %v206, %v210
    %vm212 = vweird.f32 %v202
    %vm213 = vweird.f32 %v206
    %vm214 = vmor %vm212, %vm213
    %v215 = vsel %vm214, %v206, %v211
    %v216 = vrsqrt.pop %v203
    %v217 = vmul.f32 %v216, %v203
    %v218 = vmul.f32 %v217, %v216
    %v219 = vmul.f32 0.5, %v218
    %v220 = vsub.f32 1.5, %v219
    %v221 = vmul.f32 %v216, %v220
    %vm222 = vweird.f32 %v203
    %vm223 = vweird.f32 %v216
    %vm224 = vmor %vm222, %vm223
    %v225 = vsel %vm224, %v216, %v221
    %v226 = vrsqrt.pop %v204
    %v227 = vmul.f32 %v226, %v204
    %v228 = vmul.f32 %v227, %v226
    %v229 = vmul.f32 0.5, %v228
    %v230 = vsub.f32 1.5, %v229
    %v231 = vmul.f32 %v226, %v230
    %vm232 = vweird.f32 %v204
    %vm233 = vweird.f32 %v226
    %vm234 = vmor %vm232, %vm233
    %v235 = vsel %vm234, %v226, %v231
    %v236 = vrsqrt.pop %v205
    %v237 = vmul.f32 %v236, %v205
    %v238 = vmul.f32 %v237, %v236
    %v239 = vmul.f32 0.5, %v238
    %v240 = vsub.f32 1.5, %v239
    %v241 = vmul.f32 %v236, %v240
    %vm242 = vweird.f32 %v205
    %vm243 = vweird.f32 %v236
    %vm244 = vmor %vm242, %vm243
    %v245 = vsel %vm244, %v236, %v241
    %v246 = vmul.f32 %v178, %v215
    %v247 = vmul.f32 %v179, %v225
    %v248 = vmul.f32 %v180, %v235
    %v249 = vmul.f32 %v181, %v245
    %v250 = vld [vmem:[%s5] sm:$0x1]
    %v252 = vperm.slane %v250, 0
    %v254 = vmul.f32 %v246, %v252
    %v255 = vmul.f32 %v247, %v252
    %v256 = vmul.f32 %v248, %v252
    %v257 = vmul.f32 %v249, %v252
    %v258 = vld [vmem:[%s6] sm:$0x1]
    %v260 = vperm.slane %v258, 0
    %v262 = vadd.f32 %v254, %v260
    %v263 = vadd.f32 %v255, %v260
    %v264 = vadd.f32 %v256, %v260
    %v265 = vadd.f32 %v257, %v260
    %266 = vst.msk [vmem:[#allocation3] sm:$0xff] %vm39, %v262
    %267 = vst.msk [vmem:[#allocation3 + $0x8] sm:$0xff] %vm39, %v263
    %268 = vst.msk [vmem:[#allocation3 + $0x10] sm:$0xff] %vm39, %v264
    %269 = vst.msk [vmem:[#allocation3 + $0x18] sm:$0xff] %vm39, %v265
    // Predicated region
    $region30: #{encoder_forward.13} parent=1 // pred_check
      _
    $region31: #{encoder_forward.13} parent=1 // pred_check_branch
      %271 = sbr.rel (0) target = $region33
    $region32: #{encoder_forward.13} parent=1 // pred_region
      %273 = vsyncadd [#allocation4], 0
      %s274 = sshll.u32 [#allocation3], 4
      %s275 = int_to_ptr.vmem [resolvable:$true] %s274
      %s276 = sshll.u32 %s7, 4
      %s277 = int_to_ptr.hbm [resolvable:$true] %s276
      %282 = dma.vmem_to_hbm [thread:$0]  %s275, 512, %s277, [#allocation4], 128, 128, 8
    $region33: #{encoder_forward.13} parent=1 // pred_fallthru
      _
    // Predicated region
    $region34: #{encoder_forward.13} parent=1 // pred_check
      _
    $region35: #{encoder_forward.13} parent=1 // pred_check_branch
      %284 = sbr.rel (0) target = $region37
    $region36: #{encoder_forward.13} parent=1 // pred_region
      %286 = dma.done [#allocation4], 512
    $region37: #{encoder_forward.13} parent=1 // pred_fallthru
      _
    %287 = vsyncpa [#allocation4], 1

</llo_original>
